<compile_context>
chip_gen: v5e
topology: v5e:2x2
jax: 0.10.0
libtpu: 0.0.40
codegen_flags: <defaults>
</compile_context>

<pallas_src>
import jax
import jax.numpy as jnp
from jax import lax
from jax.experimental import pallas as pl
from jax.experimental.pallas import tpu as pltpu


# ----------------------------------------------------------------------------
# Fused Pallas kernel: one grid step == B_TILE images of the batch
# ----------------------------------------------------------------------------
def fused_kernel(x_ref, w1_ref, w2_ref, wfc_ref, bvec_ref, o_ref,
                 hp_ref, h1p_ref):
    BT, H, W, Cin = x_ref.shape
    Cmid = w1_ref.shape[1]
    num_classes = o_ref.shape[-1]
    Ho = hp_ref.shape[1]
    Wo = h1p_ref.shape[2] - 2
    M = BT * Ho * Wo

    # ---------------- maxpool 3x3, stride 2, pad 1 ----------------
    # H pass: out row ho = max(x[2ho-1], x[2ho], x[2ho+1]); row -1 is -inf.
    # H is an untiled (leading) axis, so stride-2 reads are plain slab copies.
    neg_row = jnp.full((BT, 1, W, Cin), -jnp.inf, jnp.float32)
    rowmax = jnp.maximum(x_ref[:, pl.ds(0, Ho, 2), :, :],
                         x_ref[:, pl.ds(1, Ho, 2), :, :])
    up = jnp.concatenate([neg_row, x_ref[:, pl.ds(1, Ho - 1, 2), :, :]], axis=1)
    rowmax = jnp.maximum(rowmax, up)                          # (BT, Ho, W, Cin)

    # W pass: only ONE -inf pad column at the front (no full-plane -inf fills),
    # then three stride-2 sublane reads.
    hp_ref[:, :, 0:1, :] = jnp.full((BT, Ho, 1, Cin), -jnp.inf, jnp.float32)
    hp_ref[:, :, 1:W + 1, :] = rowmax
    pooled = jnp.maximum(
        jnp.maximum(hp_ref[:, :, pl.ds(0, Wo, 2), :],
                    hp_ref[:, :, pl.ds(1, Wo, 2), :]),
        hp_ref[:, :, pl.ds(2, Wo, 2), :])                     # (BT, Ho, Wo, Cin)

    # ---------------- 1x1 conv (BN scale pre-folded) + bias + ReLU ----------------
    b1 = bvec_ref[0:1, 0:Cmid]
    h1 = jnp.dot(pooled.reshape(M, Cin), w1_ref[...],
                 preferred_element_type=jnp.float32)
    h1 = jnp.maximum(h1 + b1, 0.0)                            # (M, Cmid)

    # -------- zero-padded mid feature map (borders only; interior overwritten) --------
    h1p_ref[:, 0:1, :, :] = jnp.zeros((BT, 1, Wo + 2, Cmid), jnp.float32)
    h1p_ref[:, Ho + 1:Ho + 2, :, :] = jnp.zeros((BT, 1, Wo + 2, Cmid), jnp.float32)
    h1p_ref[:, :, 0:1, :] = jnp.zeros((BT, Ho + 2, 1, Cmid), jnp.float32)
    h1p_ref[:, :, Wo + 1:Wo + 2, :] = jnp.zeros((BT, Ho + 2, 1, Cmid), jnp.float32)
    h1p_ref[:, 1:Ho + 1, 1:Wo + 1, :] = h1.reshape(BT, Ho, Wo, Cmid)

    # -------- 3x3 conv: 9 shifted-accumulate matmuls straight from h1p (no im2col) --------
    b2 = bvec_ref[1:2, 0:Cmid]
    acc = jnp.zeros((M, Cmid), jnp.float32)
    for dy in range(3):                                       # static 9-tap unroll
        for dx in range(3):
            tap = h1p_ref[:, dy:dy + Ho, dx:dx + Wo, :].reshape(M, Cmid)
            acc = acc + jnp.dot(tap, w2_ref[dy * 3 + dx],
                                preferred_element_type=jnp.float32)
    h2 = jnp.maximum(acc + b2, 0.0)                           # (M, Cmid)

    # ---------------- global average pool + Linear (fused epilogue) ----------------
    bfc = bvec_ref[2:3, 0:num_classes]
    feat = jnp.mean(h2.reshape(BT, Ho * Wo, Cmid), axis=1)    # (BT, Cmid)
    o_ref[...] = jnp.dot(feat, wfc_ref[...],
                         preferred_element_type=jnp.float32) + bfc


# ----------------------------------------------------------------------------
# Wrapper: one pallas_call for the whole module
# ----------------------------------------------------------------------------
def extra_label_predict(x_nchw, p):
    x = jnp.transpose(x_nchw, (0, 2, 3, 1)).astype(jnp.float32)   # NCHW -> NHWC
    B, H, W, Cin = x.shape
    assert H % 2 == 0 and W % 2 == 0, "kernel assumes even spatial dims"
    Cmid = p["w1"].shape[1]
    num_classes = p["wfc"].shape[1]
    Ho = (H + 2 - 3) // 2 + 1
    Wo = (W + 2 - 3) // 2 + 1

    # Fold BN scales into the conv weights (exact: per-output-channel scale
    # commutes with the matmul); only the biases stay in-kernel.
    w1f = (p["w1"] * p["s1"]).astype(jnp.float32)                          # (Cin, Cmid)
    w2f = (p["w2"] * p["s2"].reshape(1, 1, 1, Cmid)).reshape(9, Cmid, Cmid)
    # Stack the remaining small bias vectors into a single operand.
    padw = max(Cmid, num_classes)
    bvec = jnp.zeros((3, padw), jnp.float32)
    bvec = bvec.at[0, :Cmid].set(p["b1"][0])
    bvec = bvec.at[1, :Cmid].set(p["b2"][0])
    bvec = bvec.at[2, :num_classes].set(p["bfc"][0])

    # Batch images into each grid step so the MXU sees M = B_TILE*Ho*Wo rows
    # (128 for B=2 at 16x16 input).  grid stays a "parallel" axis for larger B.
    pix = Ho * Wo
    bt = min(B, max(1, 128 // pix)) if pix <= 128 else 1
    while B % bt:
        bt -= 1
    grid = (B // bt,)

    out = pl.pallas_call(
        fused_kernel,
        out_shape=jax.ShapeDtypeStruct((B, num_classes), jnp.float32),
        grid=grid,
        in_specs=[
            pl.BlockSpec((bt, H, W, Cin), lambda b: (b, 0, 0, 0)),
            pl.BlockSpec((Cin, Cmid), lambda b: (0, 0)),
            pl.BlockSpec((9, Cmid, Cmid), lambda b: (0, 0, 0)),
            pl.BlockSpec((Cmid, num_classes), lambda b: (0, 0)),
            pl.BlockSpec((3, padw), lambda b: (0, 0)),
        ],
        out_specs=pl.BlockSpec((bt, num_classes), lambda b: (b, 0)),
        scratch_shapes=[
            pltpu.VMEM((bt, Ho, W + 1, Cin), jnp.float32),          # row-max, 1 -inf pad col
            pltpu.VMEM((bt, Ho + 2, Wo + 2, Cmid), jnp.float32),    # zero-padded mid fmap
        ],
        compiler_params=pltpu.CompilerParams(
            dimension_semantics=("parallel",)),
    )(x, w1f, w2f, p["wfc"].astype(jnp.float32), bvec)
    return out


# ----------------------------------------------------------------------------
# Parameters (deterministic synthetic init, eval-mode folded BN)
# ----------------------------------------------------------------------------
def _fold_bn(key, channels, eps=1e-5):
    k1, k2, k3, k4 = jax.random.split(key, 4)
    gamma = 1.0 + 0.1 * jax.random.normal(k1, (channels,), jnp.float32)
    beta = 0.1 * jax.random.normal(k2, (channels,), jnp.float32)
    mean = 0.1 * jax.random.normal(k3, (channels,), jnp.float32)
    var = jnp.abs(jax.random.normal(k4, (channels,), jnp.float32)) + 0.5
    scale = gamma / jnp.sqrt(var + eps)
    bias = beta - mean * scale
    return scale.reshape(1, channels), bias.reshape(1, channels)


def init_params(key, in_channels, out_channels, num_classes):
    ks = jax.random.split(key, 6)
    s1, b1 = _fold_bn(ks[2], out_channels)
    s2, b2 = _fold_bn(ks[3], out_channels)
    return {
        # 1x1 conv weight, stored (Cin, Cout)
        "w1": 0.05 * jax.random.normal(ks[0], (in_channels, out_channels),
                                       jnp.float32),
        # 3x3 conv weight, stored HWIO (3, 3, Cout, Cout)
        "w2": 0.05 * jax.random.normal(ks[1], (3, 3, out_channels, out_channels),
                                       jnp.float32),
        "s1": s1, "b1": b1, "s2": s2, "b2": b2,
        # Linear: (in_features, num_classes) + bias
        "wfc": 0.05 * jax.random.normal(ks[4], (out_channels, num_classes),
                                        jnp.float32),
        "bfc": 0.01 * jax.random.normal(ks[5], (1, num_classes), jnp.float32),
    }


# ----------------------------------------------------------------------------
# Pure-JAX reference (for correctness check)
# ----------------------------------------------------------------------------
def reference(x_nchw, p):
    x = jnp.transpose(x_nchw, (0, 2, 3, 1)).astype(jnp.float32)
    Cin = x.shape[-1]
    Cmid = p["w1"].shape[1]
    x = lax.reduce_window(x, -jnp.inf, lax.max,
                          (1, 3, 3, 1), (1, 2, 2, 1),
                          ((0, 0), (1, 1), (1, 1), (0, 0)))
    dn = ("NHWC", "HWIO", "NHWC")
    y = lax.conv_general_dilated(x, p["w1"].reshape(1, 1, Cin, Cmid),
                                 (1, 1), ((0, 0), (0, 0)),
                                 dimension_numbers=dn)
    y = jnp.maximum(y * p["s1"].reshape(1, 1, 1, -1)
                    + p["b1"].reshape(1, 1, 1, -1), 0.0)
    y = lax.conv_general_dilated(y, p["w2"], (1, 1), ((1, 1), (1, 1)),
                                 dimension_numbers=dn)
    y = jnp.maximum(y * p["s2"].reshape(1, 1, 1, -1)
                    + p["b2"].reshape(1, 1, 1, -1), 0.0)
    y = jnp.mean(y, axis=(1, 2))
    return y @ p["wfc"] + p["bfc"][0]


if __name__ == "__main__":
    key = jax.random.PRNGKey(0)
    kx, kp = jax.random.split(key)

    B, Cin, H, W = 2, 16, 16, 16          # small shapes consistent with the module
    Cout, num_classes = 32, 16

    x = jax.random.normal(kx, (B, Cin, H, W), jnp.float32)
    params = init_params(kp, Cin, Cout, num_classes)

    fwd = jax.jit(extra_label_predict)
    out = jax.block_until_ready(fwd(x, params))

    ref = reference(x, params)
    assert out.shape == (B, num_classes), out.shape
    assert jnp.allclose(out, ref, rtol=1e-3, atol=1e-3), \
        float(jnp.max(jnp.abs(out - ref)))

    print("KERNEL_OK")
</pallas_src>

<mosaic_0001>
module attributes {stable_mosaic.version = 11 : i64} {
  func.func @fused_kernel(%arg0: i32, %arg1: memref<2x16x16x16xf32, #tpu.memory_space<vmem>>, %arg2: memref<16x32xf32, #tpu.memory_space<vmem>>, %arg3: memref<9x32x32xf32, #tpu.memory_space<vmem>>, %arg4: memref<32x16xf32, #tpu.memory_space<vmem>>, %arg5: memref<3x32xf32, #tpu.memory_space<vmem>>, %arg6: memref<2x16xf32, #tpu.memory_space<vmem>>, %arg7: memref<2x8x17x16xf32, #tpu.memory_space<vmem>>, %arg8: memref<2x10x10x32xf32, #tpu.memory_space<vmem>>) attributes {dimension_semantics = [#tpu.dimension_semantics<parallel>], iteration_bounds = array<i64: 1>, scalar_prefetch = 0 : i64, scratch_operands = 2 : i64, tpu.core_type = #tpu.core_type<tc>, window_params = [{transform_indices = @transform_0, window_bounds = array<i64: 2, 16, 16, 16>}, {pipeline_mode = #tpu.pipeline_mode<synchronous>, transform_indices = @transform_1, window_bounds = array<i64: 16, 32>}, {pipeline_mode = #tpu.pipeline_mode<synchronous>, transform_indices = @transform_2, window_bounds = array<i64: 9, 32, 32>}, {pipeline_mode = #tpu.pipeline_mode<synchronous>, transform_indices = @transform_3, window_bounds = array<i64: 32, 16>}, {pipeline_mode = #tpu.pipeline_mode<synchronous>, transform_indices = @transform_4, window_bounds = array<i64: 3, 32>}, {transform_indices = @transform_5, window_bounds = array<i64: 2, 16>}]} {
    %cst = arith.constant 0xFF800000 : f32
    %0 = vector.broadcast %cst : f32 to vector<2x1x16x16xf32>
    %c0 = arith.constant 0 : index
    %c0_0 = arith.constant 0 : index
    %c0_1 = arith.constant 0 : index
    %c0_2 = arith.constant 0 : index
    %1 = tpu.strided_load %arg1[%c0, %c0_0, %c0_1, %c0_2] {strides = array<i32: 1, 2, 1, 1>} : memref<2x16x16x16xf32, #tpu.memory_space<vmem>>, vector<2x8x16x16xf32>
    %c0_3 = arith.constant 0 : index
    %c1 = arith.constant 1 : index
    %c0_4 = arith.constant 0 : index
    %c0_5 = arith.constant 0 : index
    %2 = tpu.strided_load %arg1[%c0_3, %c1, %c0_4, %c0_5] {strides = array<i32: 1, 2, 1, 1>} : memref<2x16x16x16xf32, #tpu.memory_space<vmem>>, vector<2x8x16x16xf32>
    %3 = arith.maximumf %1, %2 : vector<2x8x16x16xf32>
    %c0_6 = arith.constant 0 : index
    %c1_7 = arith.constant 1 : index
    %c0_8 = arith.constant 0 : index
    %c0_9 = arith.constant 0 : index
    %4 = tpu.strided_load %arg1[%c0_6, %c1_7, %c0_8, %c0_9] {strides = array<i32: 1, 2, 1, 1>} : memref<2x16x16x16xf32, #tpu.memory_space<vmem>>, vector<2x7x16x16xf32>
    %5 = tpu.concatenate %0, %4 in 1 : vector<2x1x16x16xf32>, vector<2x7x16x16xf32> -> vector<2x8x16x16xf32>
    %6 = arith.maximumf %3, %5 : vector<2x8x16x16xf32>
    %cst_10 = arith.constant 0xFF800000 : f32
    %7 = vector.broadcast %cst_10 : f32 to vector<2x8x1x16xf32>
    %c0_11 = arith.constant 0 : index
    %c0_12 = arith.constant 0 : index
    %c0_13 = arith.constant 0 : index
    %c0_14 = arith.constant 0 : index
    %8 = vector.load %arg7[%c0_11, %c0_12, %c0_13, %c0_14] : memref<2x8x17x16xf32, #tpu.memory_space<vmem>>, vector<2x8x1x16xf32>
    tpu.vector_store %arg7[%c0_11, %c0_12, %c0_13, %c0_14], %7 {strides = array<i32>} : memref<2x8x17x16xf32, #tpu.memory_space<vmem>>, vector<2x8x1x16xf32>,
    %c0_15 = arith.constant 0 : index
    %c0_16 = arith.constant 0 : index
    %c1_17 = arith.constant 1 : index
    %c0_18 = arith.constant 0 : index
    %9 = vector.load %arg7[%c0_15, %c0_16, %c1_17, %c0_18] : memref<2x8x17x16xf32, #tpu.memory_space<vmem>>, vector<2x8x16x16xf32>
    tpu.vector_store %arg7[%c0_15, %c0_16, %c1_17, %c0_18], %6 {strides = array<i32>} : memref<2x8x17x16xf32, #tpu.memory_space<vmem>>, vector<2x8x16x16xf32>,
    %c0_19 = arith.constant 0 : index
    %c0_20 = arith.constant 0 : index
    %c0_21 = arith.constant 0 : index
    %c0_22 = arith.constant 0 : index
    %10 = tpu.strided_load %arg7[%c0_19, %c0_20, %c0_21, %c0_22] {strides = array<i32: 1, 1, 2, 1>} : memref<2x8x17x16xf32, #tpu.memory_space<vmem>>, vector<2x8x8x16xf32>
    %c0_23 = arith.constant 0 : index
    %c0_24 = arith.constant 0 : index
    %c1_25 = arith.constant 1 : index
    %c0_26 = arith.constant 0 : index
    %11 = tpu.strided_load %arg7[%c0_23, %c0_24, %c1_25, %c0_26] {strides = array<i32: 1, 1, 2, 1>} : memref<2x8x17x16xf32, #tpu.memory_space<vmem>>, vector<2x8x8x16xf32>
    %12 = arith.maximumf %10, %11 : vector<2x8x8x16xf32>
    %c0_27 = arith.constant 0 : index
    %c0_28 = arith.constant 0 : index
    %c2 = arith.constant 2 : index
    %c0_29 = arith.constant 0 : index
    %13 = tpu.strided_load %arg7[%c0_27, %c0_28, %c2, %c0_29] {strides = array<i32: 1, 1, 2, 1>} : memref<2x8x17x16xf32, #tpu.memory_space<vmem>>, vector<2x8x8x16xf32>
    %14 = arith.maximumf %12, %13 : vector<2x8x8x16xf32>
    %c0_30 = arith.constant 0 : index
    %c0_31 = arith.constant 0 : index
    %15 = vector.load %arg5[%c0_30, %c0_31] : memref<3x32xf32, #tpu.memory_space<vmem>>, vector<1x32xf32>
    %16 = vector.shape_cast %14 : vector<2x8x8x16xf32> to vector<128x16xf32>
    %c0_32 = arith.constant 0 : index
    %c0_33 = arith.constant 0 : index
    %17 = vector.load %arg2[%c0_32, %c0_33] : memref<16x32xf32, #tpu.memory_space<vmem>>, vector<16x32xf32>
    %cst_34 = arith.constant dense<0.000000e+00> : vector<128x32xf32>
    %18 = tpu.matmul %16, %17, %cst_34 {dimension_numbers = #tpu.dot_dimension_numbers<[1], [0], [0], [1], [0, 0, 1, 1], [], []>} : vector<128x16xf32>, vector<16x32xf32>, vector<128x32xf32> -> vector<128x32xf32>
    %19 = vector.broadcast %15 : vector<1x32xf32> to vector<128x32xf32>
    %20 = arith.addf %18, %19 : vector<128x32xf32>
    %cst_35 = arith.constant 0.000000e+00 : f32
    %21 = vector.broadcast %cst_35 : f32 to vector<128x32xf32>
    %22 = arith.maximumf %20, %21 : vector<128x32xf32>
    %cst_36 = arith.constant 0.000000e+00 : f32
    %23 = vector.broadcast %cst_36 : f32 to vector<2x1x10x32xf32>
    %c0_37 = arith.constant 0 : index
    %c0_38 = arith.constant 0 : index
    %c0_39 = arith.constant 0 : index
    %c0_40 = arith.constant 0 : index
    %24 = vector.load %arg8[%c0_37, %c0_38, %c0_39, %c0_40] : memref<2x10x10x32xf32, #tpu.memory_space<vmem>>, vector<2x1x10x32xf32>
    tpu.vector_store %arg8[%c0_37, %c0_38, %c0_39, %c0_40], %23 {strides = array<i32>} : memref<2x10x10x32xf32, #tpu.memory_space<vmem>>, vector<2x1x10x32xf32>,
    %cst_41 = arith.constant 0.000000e+00 : f32
    %25 = vector.broadcast %cst_41 : f32 to vector<2x1x10x32xf32>
    %c0_42 = arith.constant 0 : index
    %c9 = arith.constant 9 : index
    %c0_43 = arith.constant 0 : index
    %c0_44 = arith.constant 0 : index
    %26 = vector.load %arg8[%c0_42, %c9, %c0_43, %c0_44] : memref<2x10x10x32xf32, #tpu.memory_space<vmem>>, vector<2x1x10x32xf32>
    tpu.vector_store %arg8[%c0_42, %c9, %c0_43, %c0_44], %25 {strides = array<i32>} : memref<2x10x10x32xf32, #tpu.memory_space<vmem>>, vector<2x1x10x32xf32>,
    %cst_45 = arith.constant 0.000000e+00 : f32
    %27 = vector.broadcast %cst_45 : f32 to vector<2x10x1x32xf32>
    %c0_46 = arith.constant 0 : index
    %c0_47 = arith.constant 0 : index
    %c0_48 = arith.constant 0 : index
    %c0_49 = arith.constant 0 : index
    %28 = vector.load %arg8[%c0_46, %c0_47, %c0_48, %c0_49] : memref<2x10x10x32xf32, #tpu.memory_space<vmem>>, vector<2x10x1x32xf32>
    tpu.vector_store %arg8[%c0_46, %c0_47, %c0_48, %c0_49], %27 {strides = array<i32>} : memref<2x10x10x32xf32, #tpu.memory_space<vmem>>, vector<2x10x1x32xf32>,
    %cst_50 = arith.constant 0.000000e+00 : f32
    %29 = vector.broadcast %cst_50 : f32 to vector<2x10x1x32xf32>
    %c0_51 = arith.constant 0 : index
    %c0_52 = arith.constant 0 : index
    %c9_53 = arith.constant 9 : index
    %c0_54 = arith.constant 0 : index
    %30 = vector.load %arg8[%c0_51, %c0_52, %c9_53, %c0_54] : memref<2x10x10x32xf32, #tpu.memory_space<vmem>>, vector<2x10x1x32xf32>
    tpu.vector_store %arg8[%c0_51, %c0_52, %c9_53, %c0_54], %29 {strides = array<i32>} : memref<2x10x10x32xf32, #tpu.memory_space<vmem>>, vector<2x10x1x32xf32>,
    %31 = vector.shape_cast %22 : vector<128x32xf32> to vector<2x8x8x32xf32>
    %c0_55 = arith.constant 0 : index
    %c1_56 = arith.constant 1 : index
    %c1_57 = arith.constant 1 : index
    %c0_58 = arith.constant 0 : index
    %32 = vector.load %arg8[%c0_55, %c1_56, %c1_57, %c0_58] : memref<2x10x10x32xf32, #tpu.memory_space<vmem>>, vector<2x8x8x32xf32>
    tpu.vector_store %arg8[%c0_55, %c1_56, %c1_57, %c0_58], %31 {strides = array<i32>} : memref<2x10x10x32xf32, #tpu.memory_space<vmem>>, vector<2x8x8x32xf32>,
    %c1_59 = arith.constant 1 : index
    %c0_60 = arith.constant 0 : index
    %33 = vector.load %arg5[%c1_59, %c0_60] : memref<3x32xf32, #tpu.memory_space<vmem>>, vector<1x32xf32>
    %cst_61 = arith.constant 0.000000e+00 : f32
    %34 = vector.broadcast %cst_61 : f32 to vector<128x32xf32>
    %c0_62 = arith.constant 0 : index
    %c0_63 = arith.constant 0 : index
    %c0_64 = arith.constant 0 : index
    %c0_65 = arith.constant 0 : index
    %35 = vector.load %arg8[%c0_62, %c0_63, %c0_64, %c0_65] : memref<2x10x10x32xf32, #tpu.memory_space<vmem>>, vector<2x8x8x32xf32>
    %36 = vector.shape_cast %35 : vector<2x8x8x32xf32> to vector<128x32xf32>
    %c0_66 = arith.constant 0 : index
    %c0_67 = arith.constant 0 : index
    %c0_68 = arith.constant 0 : index
    %37 = vector.load %arg3[%c0_66, %c0_67, %c0_68] : memref<9x32x32xf32, #tpu.memory_space<vmem>>, vector<1x32x32xf32>
    %38 = vector.shape_cast %37 : vector<1x32x32xf32> to vector<32x32xf32>
    %cst_69 = arith.constant dense<0.000000e+00> : vector<128x32xf32>
    %39 = tpu.matmul %36, %38, %cst_69 {dimension_numbers = #tpu.dot_dimension_numbers<[1], [0], [0], [1], [0, 0, 1, 1], [], []>} : vector<128x32xf32>, vector<32x32xf32>, vector<128x32xf32> -> vector<128x32xf32>
    %40 = arith.addf %34, %39 : vector<128x32xf32>
    %c0_70 = arith.constant 0 : index
    %c0_71 = arith.constant 0 : index
    %c1_72 = arith.constant 1 : index
    %c0_73 = arith.constant 0 : index
    %41 = vector.load %arg8[%c0_70, %c0_71, %c1_72, %c0_73] : memref<2x10x10x32xf32, #tpu.memory_space<vmem>>, vector<2x8x8x32xf32>
    %42 = vector.shape_cast %41 : vector<2x8x8x32xf32> to vector<128x32xf32>
    %c1_74 = arith.constant 1 : index
    %c0_75 = arith.constant 0 : index
    %c0_76 = arith.constant 0 : index
    %43 = vector.load %arg3[%c1_74, %c0_75, %c0_76] : memref<9x32x32xf32, #tpu.memory_space<vmem>>, vector<1x32x32xf32>
    %44 = vector.shape_cast %43 : vector<1x32x32xf32> to vector<32x32xf32>
    %cst_77 = arith.constant dense<0.000000e+00> : vector<128x32xf32>
    %45 = tpu.matmul %42, %44, %cst_77 {dimension_numbers = #tpu.dot_dimension_numbers<[1], [0], [0], [1], [0, 0, 1, 1], [], []>} : vector<128x32xf32>, vector<32x32xf32>, vector<128x32xf32> -> vector<128x32xf32>
    %46 = arith.addf %40, %45 : vector<128x32xf32>
    %c0_78 = arith.constant 0 : index
    %c0_79 = arith.constant 0 : index
    %c2_80 = arith.constant 2 : index
    %c0_81 = arith.constant 0 : index
    %47 = vector.load %arg8[%c0_78, %c0_79, %c2_80, %c0_81] : memref<2x10x10x32xf32, #tpu.memory_space<vmem>>, vector<2x8x8x32xf32>
    %48 = vector.shape_cast %47 : vector<2x8x8x32xf32> to vector<128x32xf32>
    %c2_82 = arith.constant 2 : index
    %c0_83 = arith.constant 0 : index
    %c0_84 = arith.constant 0 : index
    %49 = vector.load %arg3[%c2_82, %c0_83, %c0_84] : memref<9x32x32xf32, #tpu.memory_space<vmem>>, vector<1x32x32xf32>
    %50 = vector.shape_cast %49 : vector<1x32x32xf32> to vector<32x32xf32>
    %cst_85 = arith.constant dense<0.000000e+00> : vector<128x32xf32>
    %51 = tpu.matmul %48, %50, %cst_85 {dimension_numbers = #tpu.dot_dimension_numbers<[1], [0], [0], [1], [0, 0, 1, 1], [], []>} : vector<128x32xf32>, vector<32x32xf32>, vector<128x32xf32> -> vector<128x32xf32>
    %52 = arith.addf %46, %51 : vector<128x32xf32>
    %c0_86 = arith.constant 0 : index
    %c1_87 = arith.constant 1 : index
    %c0_88 = arith.constant 0 : index
    %c0_89 = arith.constant 0 : index
    %53 = vector.load %arg8[%c0_86, %c1_87, %c0_88, %c0_89] : memref<2x10x10x32xf32, #tpu.memory_space<vmem>>, vector<2x8x8x32xf32>
    %54 = vector.shape_cast %53 : vector<2x8x8x32xf32> to vector<128x32xf32>
    %c3 = arith.constant 3 : index
    %c0_90 = arith.constant 0 : index
    %c0_91 = arith.constant 0 : index
    %55 = vector.load %arg3[%c3, %c0_90, %c0_91] : memref<9x32x32xf32, #tpu.memory_space<vmem>>, vector<1x32x32xf32>
    %56 = vector.shape_cast %55 : vector<1x32x32xf32> to vector<32x32xf32>
    %cst_92 = arith.constant dense<0.000000e+00> : vector<128x32xf32>
    %57 = tpu.matmul %54, %56, %cst_92 {dimension_numbers = #tpu.dot_dimension_numbers<[1], [0], [0], [1], [0, 0, 1, 1], [], []>} : vector<128x32xf32>, vector<32x32xf32>, vector<128x32xf32> -> vector<128x32xf32>
    %58 = arith.addf %52, %57 : vector<128x32xf32>
    %c0_93 = arith.constant 0 : index
    %c1_94 = arith.constant 1 : index
    %c1_95 = arith.constant 1 : index
    %c0_96 = arith.constant 0 : index
    %59 = vector.load %arg8[%c0_93, %c1_94, %c1_95, %c0_96] : memref<2x10x10x32xf32, #tpu.memory_space<vmem>>, vector<2x8x8x32xf32>
    %60 = vector.shape_cast %59 : vector<2x8x8x32xf32> to vector<128x32xf32>
    %c4 = arith.constant 4 : index
    %c0_97 = arith.constant 0 : index
    %c0_98 = arith.constant 0 : index
    %61 = vector.load %arg3[%c4, %c0_97, %c0_98] : memref<9x32x32xf32, #tpu.memory_space<vmem>>, vector<1x32x32xf32>
    %62 = vector.shape_cast %61 : vector<1x32x32xf32> to vector<32x32xf32>
    %cst_99 = arith.constant dense<0.000000e+00> : vector<128x32xf32>
    %63 = tpu.matmul %60, %62, %cst_99 {dimension_numbers = #tpu.dot_dimension_numbers<[1], [0], [0], [1], [0, 0, 1, 1], [], []>} : vector<128x32xf32>, vector<32x32xf32>, vector<128x32xf32> -> vector<128x32xf32>
    %64 = arith.addf %58, %63 : vector<128x32xf32>
    %c0_100 = arith.constant 0 : index
    %c1_101 = arith.constant 1 : index
    %c2_102 = arith.constant 2 : index
    %c0_103 = arith.constant 0 : index
    %65 = vector.load %arg8[%c0_100, %c1_101, %c2_102, %c0_103] : memref<2x10x10x32xf32, #tpu.memory_space<vmem>>, vector<2x8x8x32xf32>
    %66 = vector.shape_cast %65 : vector<2x8x8x32xf32> to vector<128x32xf32>
    %c5 = arith.constant 5 : index
    %c0_104 = arith.constant 0 : index
    %c0_105 = arith.constant 0 : index
    %67 = vector.load %arg3[%c5, %c0_104, %c0_105] : memref<9x32x32xf32, #tpu.memory_space<vmem>>, vector<1x32x32xf32>
    %68 = vector.shape_cast %67 : vector<1x32x32xf32> to vector<32x32xf32>
    %cst_106 = arith.constant dense<0.000000e+00> : vector<128x32xf32>
    %69 = tpu.matmul %66, %68, %cst_106 {dimension_numbers = #tpu.dot_dimension_numbers<[1], [0], [0], [1], [0, 0, 1, 1], [], []>} : vector<128x32xf32>, vector<32x32xf32>, vector<128x32xf32> -> vector<128x32xf32>
    %70 = arith.addf %64, %69 : vector<128x32xf32>
    %c0_107 = arith.constant 0 : index
    %c2_108 = arith.constant 2 : index
    %c0_109 = arith.constant 0 : index
    %c0_110 = arith.constant 0 : index
    %71 = vector.load %arg8[%c0_107, %c2_108, %c0_109, %c0_110] : memref<2x10x10x32xf32, #tpu.memory_space<vmem>>, vector<2x8x8x32xf32>
    %72 = vector.shape_cast %71 : vector<2x8x8x32xf32> to vector<128x32xf32>
    %c6 = arith.constant 6 : index
    %c0_111 = arith.constant 0 : index
    %c0_112 = arith.constant 0 : index
    %73 = vector.load %arg3[%c6, %c0_111, %c0_112] : memref<9x32x32xf32, #tpu.memory_space<vmem>>, vector<1x32x32xf32>
    %74 = vector.shape_cast %73 : vector<1x32x32xf32> to vector<32x32xf32>
    %cst_113 = arith.constant dense<0.000000e+00> : vector<128x32xf32>
    %75 = tpu.matmul %72, %74, %cst_113 {dimension_numbers = #tpu.dot_dimension_numbers<[1], [0], [0], [1], [0, 0, 1, 1], [], []>} : vector<128x32xf32>, vector<32x32xf32>, vector<128x32xf32> -> vector<128x32xf32>
    %76 = arith.addf %70, %75 : vector<128x32xf32>
    %c0_114 = arith.constant 0 : index
    %c2_115 = arith.constant 2 : index
    %c1_116 = arith.constant 1 : index
    %c0_117 = arith.constant 0 : index
    %77 = vector.load %arg8[%c0_114, %c2_115, %c1_116, %c0_117] : memref<2x10x10x32xf32, #tpu.memory_space<vmem>>, vector<2x8x8x32xf32>
    %78 = vector.shape_cast %77 : vector<2x8x8x32xf32> to vector<128x32xf32>
    %c7 = arith.constant 7 : index
    %c0_118 = arith.constant 0 : index
    %c0_119 = arith.constant 0 : index
    %79 = vector.load %arg3[%c7, %c0_118, %c0_119] : memref<9x32x32xf32, #tpu.memory_space<vmem>>, vector<1x32x32xf32>
    %80 = vector.shape_cast %79 : vector<1x32x32xf32> to vector<32x32xf32>
    %cst_120 = arith.constant dense<0.000000e+00> : vector<128x32xf32>
    %81 = tpu.matmul %78, %80, %cst_120 {dimension_numbers = #tpu.dot_dimension_numbers<[1], [0], [0], [1], [0, 0, 1, 1], [], []>} : vector<128x32xf32>, vector<32x32xf32>, vector<128x32xf32> -> vector<128x32xf32>
    %82 = arith.addf %76, %81 : vector<128x32xf32>
    %c0_121 = arith.constant 0 : index
    %c2_122 = arith.constant 2 : index
    %c2_123 = arith.constant 2 : index
    %c0_124 = arith.constant 0 : index
    %83 = vector.load %arg8[%c0_121, %c2_122, %c2_123, %c0_124] : memref<2x10x10x32xf32, #tpu.memory_space<vmem>>, vector<2x8x8x32xf32>
    %84 = vector.shape_cast %83 : vector<2x8x8x32xf32> to vector<128x32xf32>
    %c8 = arith.constant 8 : index
    %c0_125 = arith.constant 0 : index
    %c0_126 = arith.constant 0 : index
    %85 = vector.load %arg3[%c8, %c0_125, %c0_126] : memref<9x32x32xf32, #tpu.memory_space<vmem>>, vector<1x32x32xf32>
    %86 = vector.shape_cast %85 : vector<1x32x32xf32> to vector<32x32xf32>
    %cst_127 = arith.constant dense<0.000000e+00> : vector<128x32xf32>
    %87 = tpu.matmul %84, %86, %cst_127 {dimension_numbers = #tpu.dot_dimension_numbers<[1], [0], [0], [1], [0, 0, 1, 1], [], []>} : vector<128x32xf32>, vector<32x32xf32>, vector<128x32xf32> -> vector<128x32xf32>
    %88 = arith.addf %82, %87 : vector<128x32xf32>
    %89 = vector.broadcast %33 : vector<1x32xf32> to vector<128x32xf32>
    %90 = arith.addf %88, %89 : vector<128x32xf32>
    %cst_128 = arith.constant 0.000000e+00 : f32
    %91 = vector.broadcast %cst_128 : f32 to vector<128x32xf32>
    %92 = arith.maximumf %90, %91 : vector<128x32xf32>
    %c2_129 = arith.constant 2 : index
    %c0_130 = arith.constant 0 : index
    %93 = vector.load %arg5[%c2_129, %c0_130] : memref<3x32xf32, #tpu.memory_space<vmem>>, vector<1x16xf32>
    %94 = vector.shape_cast %92 : vector<128x32xf32> to vector<2x64x32xf32>
    %cst_131 = arith.constant dense<0.000000e+00> : vector<2x32xf32>
    %95 = vector.multi_reduction <add>, %94, %cst_131 [1] : vector<2x64x32xf32> to vector<2x32xf32>
    %cst_132 = arith.constant 6.400000e+01 : f32
    %96 = vector.broadcast %cst_132 : f32 to vector<2x32xf32>
    %97 = arith.divf %95, %96 : vector<2x32xf32>
    %c0_133 = arith.constant 0 : index
    %c0_134 = arith.constant 0 : index
    %98 = vector.load %arg4[%c0_133, %c0_134] : memref<32x16xf32, #tpu.memory_space<vmem>>, vector<32x16xf32>
    %cst_135 = arith.constant dense<0.000000e+00> : vector<2x16xf32>
    %99 = tpu.matmul %97, %98, %cst_135 {dimension_numbers = #tpu.dot_dimension_numbers<[1], [0], [0], [1], [0, 0, 1, 1], [], []>} : vector<2x32xf32>, vector<32x16xf32>, vector<2x16xf32> -> vector<2x16xf32>
    %100 = vector.broadcast %93 : vector<1x16xf32> to vector<2x16xf32>
    %101 = arith.addf %99, %100 : vector<2x16xf32>
    %c0_136 = arith.constant 0 : index
    %c0_137 = arith.constant 0 : index
    %102 = vector.load %arg6[%c0_136, %c0_137] : memref<2x16xf32, #tpu.memory_space<vmem>>, vector<2x16xf32>
    tpu.vector_store %arg6[%c0_136, %c0_137], %101 {strides = array<i32>} : memref<2x16xf32, #tpu.memory_space<vmem>>, vector<2x16xf32>,
    return
  }
  func.func @transform_0(%arg0: i32) -> (i32, i32, i32, i32) {
    %c0_i32 = arith.constant 0 : i32
    %c0_i32_0 = arith.constant 0 : i32
    %c0_i32_1 = arith.constant 0 : i32
    %c0_i32_2 = arith.constant 0 : i32
    return %arg0, %c0_i32, %c0_i32_0, %c0_i32_1 : i32, i32, i32, i32
  }
  func.func @transform_1(%arg0: i32) -> (i32, i32) {
    %c0_i32 = arith.constant 0 : i32
    %c0_i32_0 = arith.constant 0 : i32
    %c0_i32_1 = arith.constant 0 : i32
    return %c0_i32, %c0_i32_0 : i32, i32
  }
  func.func @transform_2(%arg0: i32) -> (i32, i32, i32) {
    %c0_i32 = arith.constant 0 : i32
    %c0_i32_0 = arith.constant 0 : i32
    %c0_i32_1 = arith.constant 0 : i32
    %c0_i32_2 = arith.constant 0 : i32
    return %c0_i32, %c0_i32_0, %c0_i32_1 : i32, i32, i32
  }
  func.func @transform_3(%arg0: i32) -> (i32, i32) {
    %c0_i32 = arith.constant 0 : i32
    %c0_i32_0 = arith.constant 0 : i32
    %c0_i32_1 = arith.constant 0 : i32
    return %c0_i32, %c0_i32_0 : i32, i32
  }
  func.func @transform_4(%arg0: i32) -> (i32, i32) {
    %c0_i32 = arith.constant 0 : i32
    %c0_i32_0 = arith.constant 0 : i32
    %c0_i32_1 = arith.constant 0 : i32
    return %c0_i32, %c0_i32_0 : i32, i32
  }
  func.func @transform_5(%arg0: i32) -> (i32, i32) {
    %c0_i32 = arith.constant 0 : i32
    %c0_i32_0 = arith.constant 0 : i32
    return %arg0, %c0_i32 : i32, i32
  }
}

</mosaic_0001>

<llo_original>
// kernel: extra_label_predict.1
$region0: #{extra_label_predict.1}
  #allocation0 [shape = 'u32[]', space=smem, size = 0x4, offset = 0x4, fixed_abs, tag = 'smem constant byte address 0x4 - core index']
  #allocation1 [shape = 'u32[72,128]{1,0:T(1,128)}', space=vmem, size = 0x9000, scoped, tag = 'internal scratch']
  #allocation2 [shape = 'f32[2,8,17,16]{3,2,1,0:T(8,128)}', space=vmem, size = 0x30000, scoped, tag = 'scratch operand']
  #allocation3 [shape = 'f32[2,10,10,32]{3,2,1,0:T(8,128)}', space=vmem, size = 0x28000, scoped, tag = 'scratch operand']
  %s0 = inlined_call_operand.vmem [shape: f32[2,16,16,16], index: 0, kind: input, shape index: {}]
  %s1 = inlined_call_operand.vmem [shape: f32[16,32], index: 1, kind: input, shape index: {}]
  %s2 = inlined_call_operand.vmem [shape: f32[9,32,32], index: 2, kind: input, shape index: {}]
  %s3 = inlined_call_operand.vmem [shape: f32[32,16], index: 3, kind: input, shape index: {}]
  %s4 = inlined_call_operand.vmem [shape: f32[3,32], index: 4, kind: input, shape index: {}]
  %s5 = inlined_call_operand.hbm [shape: f32[2,16], index: 5, kind: output, shape index: {}]
  %s6 = sld [smem:[#allocation0]]
  $region30: #{extra_label_predict.1} parent=0
    _
  %s8 = ssub.s32 1, %s6
  %s9 = scalar_select 0, %s8, %s6
  $region1: #{extra_label_predict.1} parent=0
    #allocation4 [shape = 'u8[1024]{0}', space=vmem, size = 0x400, scoped, tag = 'output window, operand 0, single buffered']
    #allocation5 [shape = 's32[1]{0}', space=sflag, size = 0x4, scoped, tag = 'scoped memory for extra_label_predict.1']
    %10 = vsyncpa [#allocation5], 0
    // Predicated region
    $region2: #{extra_label_predict.1} parent=1 // pred_check
      _
    $region3: #{extra_label_predict.1} parent=1 // pred_check_branch
      %12 = sbr.rel (0) target = $region5
    $region4: #{extra_label_predict.1} parent=1 // pred_region
      _
    $region5: #{extra_label_predict.1} parent=1 // pred_fallthru
      _
    // Predicated region
    $region6: #{extra_label_predict.1} parent=1 // pred_check
      _
    $region7: #{extra_label_predict.1} parent=1 // pred_check_branch
      %14 = sbr.rel (0) target = $region9
    $region8: #{extra_label_predict.1} parent=1 // pred_region
      _
    $region9: #{extra_label_predict.1} parent=1 // pred_fallthru
      _
    // Predicated region
    $region10: #{extra_label_predict.1} parent=1 // pred_check
      _
    $region11: #{extra_label_predict.1} parent=1 // pred_check_branch
      %16 = sbr.rel (0) target = $region13
    $region12: #{extra_label_predict.1} parent=1 // pred_region
      _
    $region13: #{extra_label_predict.1} parent=1 // pred_fallthru
      _
    // Predicated region
    $region14: #{extra_label_predict.1} parent=1 // pred_check
      _
    $region15: #{extra_label_predict.1} parent=1 // pred_check_branch
      %18 = sbr.rel (0) target = $region17
    $region16: #{extra_label_predict.1} parent=1 // pred_region
      _
    $region17: #{extra_label_predict.1} parent=1 // pred_fallthru
      _
    // Predicated region
    $region18: #{extra_label_predict.1} parent=1 // pred_check
      _
    $region19: #{extra_label_predict.1} parent=1 // pred_check_branch
      %20 = sbr.rel (0) target = $region21
    $region20: #{extra_label_predict.1} parent=1 // pred_region
      _
    $region21: #{extra_label_predict.1} parent=1 // pred_fallthru
      _
    %v21 = vld [vmem:[%s0] sm:$0xff]
    %v22 = vld [vmem:[%s0 + $0x8] sm:$0xff]
    %v23 = vld [vmem:[%s0 + $0x20] sm:$0xff]
    %v24 = vld [vmem:[%s0 + $0x28] sm:$0xff]
    %v25 = vld [vmem:[%s0 + $0x40] sm:$0xff]
    %v26 = vld [vmem:[%s0 + $0x48] sm:$0xff]
    %v27 = vld [vmem:[%s0 + $0x60] sm:$0xff]
    %v28 = vld [vmem:[%s0 + $0x68] sm:$0xff]
    %v29 = vld [vmem:[%s0 + $0x80] sm:$0xff]
    %v30 = vld [vmem:[%s0 + $0x88] sm:$0xff]
    %v31 = vld [vmem:[%s0 + $0xa0] sm:$0xff]
    %v32 = vld [vmem:[%s0 + $0xa8] sm:$0xff]
    %v33 = vld [vmem:[%s0 + $0xc0] sm:$0xff]
    %v34 = vld [vmem:[%s0 + $0xc8] sm:$0xff]
    %v35 = vld [vmem:[%s0 + $0xe0] sm:$0xff]
    %v36 = vld [vmem:[%s0 + $0xe8] sm:$0xff]
    %v37 = vld [vmem:[%s0 + $0x100] sm:$0xff]
    %v38 = vld [vmem:[%s0 + $0x108] sm:$0xff]
    %v39 = vld [vmem:[%s0 + $0x120] sm:$0xff]
    %v40 = vld [vmem:[%s0 + $0x128] sm:$0xff]
    %v41 = vld [vmem:[%s0 + $0x140] sm:$0xff]
    %v42 = vld [vmem:[%s0 + $0x148] sm:$0xff]
    %v43 = vld [vmem:[%s0 + $0x160] sm:$0xff]
    %v44 = vld [vmem:[%s0 + $0x168] sm:$0xff]
    %v45 = vld [vmem:[%s0 + $0x180] sm:$0xff]
    %v46 = vld [vmem:[%s0 + $0x188] sm:$0xff]
    %v47 = vld [vmem:[%s0 + $0x1a0] sm:$0xff]
    %v48 = vld [vmem:[%s0 + $0x1a8] sm:$0xff]
    %v49 = vld [vmem:[%s0 + $0x1c0] sm:$0xff]
    %v50 = vld [vmem:[%s0 + $0x1c8] sm:$0xff]
    %v51 = vld [vmem:[%s0 + $0x1e0] sm:$0xff]
    %v52 = vld [vmem:[%s0 + $0x1e8] sm:$0xff]
    %s53 = scalar_lea.vmem %s0, 16
    %v54 = vld [vmem:[%s53] sm:$0xff]
    %v55 = vld [vmem:[%s53 + $0x8] sm:$0xff]
    %v56 = vld [vmem:[%s53 + $0x20] sm:$0xff]
    %v57 = vld [vmem:[%s53 + $0x28] sm:$0xff]
    %v58 = vld [vmem:[%s53 + $0x40] sm:$0xff]
    %v59 = vld [vmem:[%s53 + $0x48] sm:$0xff]
    %v60 = vld [vmem:[%s53 + $0x60] sm:$0xff]
    %v61 = vld [vmem:[%s53 + $0x68] sm:$0xff]
    %v62 = vld [vmem:[%s53 + $0x80] sm:$0xff]
    %v63 = vld [vmem:[%s53 + $0x88] sm:$0xff]
    %v64 = vld [vmem:[%s53 + $0xa0] sm:$0xff]
    %v65 = vld [vmem:[%s53 + $0xa8] sm:$0xff]
    %v66 = vld [vmem:[%s53 + $0xc0] sm:$0xff]
    %v67 = vld [vmem:[%s53 + $0xc8] sm:$0xff]
    %v68 = vld [vmem:[%s53 + $0xe0] sm:$0xff]
    %v69 = vld [vmem:[%s53 + $0xe8] sm:$0xff]
    %v70 = vld [vmem:[%s53 + $0x100] sm:$0xff]
    %v71 = vld [vmem:[%s53 + $0x108] sm:$0xff]
    %v72 = vld [vmem:[%s53 + $0x120] sm:$0xff]
    %v73 = vld [vmem:[%s53 + $0x128] sm:$0xff]
    %v74 = vld [vmem:[%s53 + $0x140] sm:$0xff]
    %v75 = vld [vmem:[%s53 + $0x148] sm:$0xff]
    %v76 = vld [vmem:[%s53 + $0x160] sm:$0xff]
    %v77 = vld [vmem:[%s53 + $0x168] sm:$0xff]
    %v78 = vld [vmem:[%s53 + $0x180] sm:$0xff]
    %v79 = vld [vmem:[%s53 + $0x188] sm:$0xff]
    %v80 = vld [vmem:[%s53 + $0x1a0] sm:$0xff]
    %v81 = vld [vmem:[%s53 + $0x1a8] sm:$0xff]
    %v82 = vld [vmem:[%s53 + $0x1c0] sm:$0xff]
    %v83 = vld [vmem:[%s53 + $0x1c8] sm:$0xff]
    %v84 = vld [vmem:[%s53 + $0x1e0] sm:$0xff]
    %v85 = vld [vmem:[%s53 + $0x1e8] sm:$0xff]
    %v86 = vmax.f32 %v21, %v54
    %v87 = vmax.f32 %v22, %v55
    %v88 = vmax.f32 %v23, %v56
    %v89 = vmax.f32 %v24, %v57
    %v90 = vmax.f32 %v25, %v58
    %v91 = vmax.f32 %v26, %v59
    %v92 = vmax.f32 %v27, %v60
    %v93 = vmax.f32 %v28, %v61
    %v94 = vmax.f32 %v29, %v62
    %v95 = vmax.f32 %v30, %v63
    %v96 = vmax.f32 %v31, %v64
    %v97 = vmax.f32 %v32, %v65
    %v98 = vmax.f32 %v33, %v66
    %v99 = vmax.f32 %v34, %v67
    %v100 = vmax.f32 %v35, %v68
    %v101 = vmax.f32 %v36, %v69
    %v102 = vmax.f32 %v37, %v70
    %v103 = vmax.f32 %v38, %v71
    %v104 = vmax.f32 %v39, %v72
    %v105 = vmax.f32 %v40, %v73
    %v106 = vmax.f32 %v41, %v74
    %v107 = vmax.f32 %v42, %v75
    %v108 = vmax.f32 %v43, %v76
    %v109 = vmax.f32 %v44, %v77
    %v110 = vmax.f32 %v45, %v78
    %v111 = vmax.f32 %v46, %v79
    %v112 = vmax.f32 %v47, %v80
    %v113 = vmax.f32 %v48, %v81
    %v114 = vmax.f32 %v49, %v82
    %v115 = vmax.f32 %v50, %v83
    %v116 = vmax.f32 %v51, %v84
    %v117 = vmax.f32 %v52, %v85
    %v118 = vmax.f32 %v88, %v54
    %v119 = vmax.f32 %v89, %v55
    %v120 = vmax.f32 %v90, %v56
    %v121 = vmax.f32 %v91, %v57
    %v122 = vmax.f32 %v92, %v58
    %v123 = vmax.f32 %v93, %v59
    %v124 = vmax.f32 %v94, %v60
    %v125 = vmax.f32 %v95, %v61
    %v126 = vmax.f32 %v96, %v62
    %v127 = vmax.f32 %v97, %v63
    %v128 = vmax.f32 %v98, %v64
    %v129 = vmax.f32 %v99, %v65
    %v130 = vmax.f32 %v100, %v66
    %v131 = vmax.f32 %v101, %v67
    %v132 = vmax.f32 %v104, %v70
    %v133 = vmax.f32 %v105, %v71
    %v134 = vmax.f32 %v106, %v72
    %v135 = vmax.f32 %v107, %v73
    %v136 = vmax.f32 %v108, %v74
    %v137 = vmax.f32 %v109, %v75
    %v138 = vmax.f32 %v110, %v76
    %v139 = vmax.f32 %v111, %v77
    %v140 = vmax.f32 %v112, %v78
    %v141 = vmax.f32 %v113, %v79
    %v142 = vmax.f32 %v114, %v80
    %v143 = vmax.f32 %v115, %v81
    %v144 = vmax.f32 %v116, %v82
    %v145 = vmax.f32 %v117, %v83
    %vm146 = vcmask 122880
    %147 = vst.msk [vmem:[#allocation2] sm:$0x1] %vm146, -inf
    %148 = vst.msk [vmem:[#allocation2 + $0x18] sm:$0x1] %vm146, -inf
    %149 = vst.msk [vmem:[#allocation2 + $0x30] sm:$0x1] %vm146, -inf
    %150 = vst.msk [vmem:[#allocation2 + $0x48] sm:$0x1] %vm146, -inf
    %151 = vst.msk [vmem:[#allocation2 + $0x60] sm:$0x1] %vm146, -inf
    %152 = vst.msk [vmem:[#allocation2 + $0x78] sm:$0x1] %vm146, -inf
    %153 = vst.msk [vmem:[#allocation2 + $0x90] sm:$0x1] %vm146, -inf
    %154 = vst.msk [vmem:[#allocation2 + $0xa8] sm:$0x1] %vm146, -inf
    %155 = vst.msk [vmem:[#allocation2 + $0xc0] sm:$0x1] %vm146, -inf
    %156 = vst.msk [vmem:[#allocation2 + $0xd8] sm:$0x1] %vm146, -inf
    %157 = vst.msk [vmem:[#allocation2 + $0xf0] sm:$0x1] %vm146, -inf
    %158 = vst.msk [vmem:[#allocation2 + $0x108] sm:$0x1] %vm146, -inf
    %159 = vst.msk [vmem:[#allocation2 + $0x120] sm:$0x1] %vm146, -inf
    %160 = vst.msk [vmem:[#allocation2 + $0x138] sm:$0x1] %vm146, -inf
    %161 = vst.msk [vmem:[#allocation2 + $0x150] sm:$0x1] %vm146, -inf
    %162 = vst.msk [vmem:[#allocation2 + $0x168] sm:$0x1] %vm146, -inf
    %vm163 = vcmask 130048
    %164 = vst.msk [vmem:[#allocation2 + $0x1] sm:$0xff] %vm163, %v86
    %165 = vst.msk [vmem:[#allocation2 + $0x9] sm:$0xff] %vm163, %v87
    %166 = vst.msk [vmem:[#allocation2 + $0x19] sm:$0xff] %vm163, %v118
    %167 = vst.msk [vmem:[#allocation2 + $0x21] sm:$0xff] %vm163, %v119
    %168 = vst.msk [vmem:[#allocation2 + $0x31] sm:$0xff] %vm163, %v120
    %169 = vst.msk [vmem:[#allocation2 + $0x39] sm:$0xff] %vm163, %v121
    %170 = vst.msk [vmem:[#allocation2 + $0x49] sm:$0xff] %vm163, %v122
    %171 = vst.msk [vmem:[#allocation2 + $0x51] sm:$0xff] %vm163, %v123
    %172 = vst.msk [vmem:[#allocation2 + $0x61] sm:$0xff] %vm163, %v124
    %173 = vst.msk [vmem:[#allocation2 + $0x69] sm:$0xff] %vm163, %v125
    %174 = vst.msk [vmem:[#allocation2 + $0x79] sm:$0xff] %vm163, %v126
    %175 = vst.msk [vmem:[#allocation2 + $0x81] sm:$0xff] %vm163, %v127
    %176 = vst.msk [vmem:[#allocation2 + $0x91] sm:$0xff] %vm163, %v128
    %177 = vst.msk [vmem:[#allocation2 + $0x99] sm:$0xff] %vm163, %v129
    %178 = vst.msk [vmem:[#allocation2 + $0xa9] sm:$0xff] %vm163, %v130
    %179 = vst.msk [vmem:[#allocation2 + $0xb1] sm:$0xff] %vm163, %v131
    %180 = vst.msk [vmem:[#allocation2 + $0xc1] sm:$0xff] %vm163, %v102
    %181 = vst.msk [vmem:[#allocation2 + $0xc9] sm:$0xff] %vm163, %v103
    %182 = vst.msk [vmem:[#allocation2 + $0xd9] sm:$0xff] %vm163, %v132
    %183 = vst.msk [vmem:[#allocation2 + $0xe1] sm:$0xff] %vm163, %v133
    %184 = vst.msk [vmem:[#allocation2 + $0xf1] sm:$0xff] %vm163, %v134
    %185 = vst.msk [vmem:[#allocation2 + $0xf9] sm:$0xff] %vm163, %v135
    %186 = vst.msk [vmem:[#allocation2 + $0x109] sm:$0xff] %vm163, %v136
    %187 = vst.msk [vmem:[#allocation2 + $0x111] sm:$0xff] %vm163, %v137
    %188 = vst.msk [vmem:[#allocation2 + $0x121] sm:$0xff] %vm163, %v138
    %189 = vst.msk [vmem:[#allocation2 + $0x129] sm:$0xff] %vm163, %v139
    %190 = vst.msk [vmem:[#allocation2 + $0x139] sm:$0xff] %vm163, %v140
    %191 = vst.msk [vmem:[#allocation2 + $0x141] sm:$0xff] %vm163, %v141
    %192 = vst.msk [vmem:[#allocation2 + $0x151] sm:$0xff] %vm163, %v142
    %193 = vst.msk [vmem:[#allocation2 + $0x159] sm:$0xff] %vm163, %v143
    %194 = vst.msk [vmem:[#allocation2 + $0x169] sm:$0xff] %vm163, %v144
    %195 = vst.msk [vmem:[#allocation2 + $0x171] sm:$0xff] %vm163, %v145
    %v196 = vld [vmem:[#allocation2] ss:$2 sm:$0xff]
    %s197 = scalar_lea.vmem [#allocation2], 24
    %v198 = vld [vmem:[%s197] ss:$2 sm:$0xff]
    %s199 = scalar_lea.vmem [#allocation2], 48
    %v200 = vld [vmem:[%s199] ss:$2 sm:$0xff]
    %s201 = scalar_lea.vmem [#allocation2], 72
    %v202 = vld [vmem:[%s201] ss:$2 sm:$0xff]
    %s203 = scalar_lea.vmem [#allocation2], 96
    %v204 = vld [vmem:[%s203] ss:$2 sm:$0xff]
    %s205 = scalar_lea.vmem [#allocation2], 120
    %v206 = vld [vmem:[%s205] ss:$2 sm:$0xff]
    %s207 = scalar_lea.vmem [#allocation2], 144
    %v208 = vld [vmem:[%s207] ss:$2 sm:$0xff]
    %s209 = scalar_lea.vmem [#allocation2], 168
    %v210 = vld [vmem:[%s209] ss:$2 sm:$0xff]
    %s211 = scalar_lea.vmem [#allocation2], 192
    %v212 = vld [vmem:[%s211] ss:$2 sm:$0xff]
    %s213 = scalar_lea.vmem [#allocation2], 216
    %v214 = vld [vmem:[%s213] ss:$2 sm:$0xff]
    %s215 = scalar_lea.vmem [#allocation2], 240
    %v216 = vld [vmem:[%s215] ss:$2 sm:$0xff]
    %s217 = scalar_lea.vmem [#allocation2], 264
    %v218 = vld [vmem:[%s217] ss:$2 sm:$0xff]
    %s219 = scalar_lea.vmem [#allocation2], 288
    %v220 = vld [vmem:[%s219] ss:$2 sm:$0xff]
    %s221 = scalar_lea.vmem [#allocation2], 312
    %v222 = vld [vmem:[%s221] ss:$2 sm:$0xff]
    %s223 = scalar_lea.vmem [#allocation2], 336
    %v224 = vld [vmem:[%s223] ss:$2 sm:$0xff]
    %s225 = scalar_lea.vmem [#allocation2], 360
    %v226 = vld [vmem:[%s225] ss:$2 sm:$0xff]
    %s227 = scalar_lea.vmem [#allocation2], 1
    %v228 = vld [vmem:[%s227] ss:$2 sm:$0xff]
    %s229 = scalar_lea.vmem [#allocation2], 25
    %v230 = vld [vmem:[%s229] ss:$2 sm:$0xff]
    %s231 = scalar_lea.vmem [#allocation2], 49
    %v232 = vld [vmem:[%s231] ss:$2 sm:$0xff]
    %s233 = scalar_lea.vmem [#allocation2], 73
    %v234 = vld [vmem:[%s233] ss:$2 sm:$0xff]
    %s235 = scalar_lea.vmem [#allocation2], 97
    %v236 = vld [vmem:[%s235] ss:$2 sm:$0xff]
    %s237 = scalar_lea.vmem [#allocation2], 121
    %v238 = vld [vmem:[%s237] ss:$2 sm:$0xff]
    %s239 = scalar_lea.vmem [#allocation2], 145
    %v240 = vld [vmem:[%s239] ss:$2 sm:$0xff]
    %s241 = scalar_lea.vmem [#allocation2], 169
    %v242 = vld [vmem:[%s241] ss:$2 sm:$0xff]
    %s243 = scalar_lea.vmem [#allocation2], 193
    %v244 = vld [vmem:[%s243] ss:$2 sm:$0xff]
    %s245 = scalar_lea.vmem [#allocation2], 217
    %v246 = vld [vmem:[%s245] ss:$2 sm:$0xff]
    %s247 = scalar_lea.vmem [#allocation2], 241
    %v248 = vld [vmem:[%s247] ss:$2 sm:$0xff]
    %s249 = scalar_lea.vmem [#allocation2], 265
    %v250 = vld [vmem:[%s249] ss:$2 sm:$0xff]
    %s251 = scalar_lea.vmem [#allocation2], 289
    %v252 = vld [vmem:[%s251] ss:$2 sm:$0xff]
    %s253 = scalar_lea.vmem [#allocation2], 313
    %v254 = vld [vmem:[%s253] ss:$2 sm:$0xff]
    %s255 = scalar_lea.vmem [#allocation2], 337
    %v256 = vld [vmem:[%s255] ss:$2 sm:$0xff]
    %s257 = scalar_lea.vmem [#allocation2], 361
    %v258 = vld [vmem:[%s257] ss:$2 sm:$0xff]
    %v259 = vmax.f32 %v196, %v228
    %v260 = vmax.f32 %v198, %v230
    %v261 = vmax.f32 %v200, %v232
    %v262 = vmax.f32 %v202, %v234
    %v263 = vmax.f32 %v204, %v236
    %v264 = vmax.f32 %v206, %v238
    %v265 = vmax.f32 %v208, %v240
    %v266 = vmax.f32 %v210, %v242
    %v267 = vmax.f32 %v212, %v244
    %v268 = vmax.f32 %v214, %v246
    %v269 = vmax.f32 %v216, %v248
    %v270 = vmax.f32 %v218, %v250
    %v271 = vmax.f32 %v220, %v252
    %v272 = vmax.f32 %v222, %v254
    %v273 = vmax.f32 %v224, %v256
    %v274 = vmax.f32 %v226, %v258
    %s275 = scalar_lea.vmem [#allocation2], 2
    %v276 = vld [vmem:[%s275] ss:$2 sm:$0xff]
    %s277 = scalar_lea.vmem [#allocation2], 26
    %v278 = vld [vmem:[%s277] ss:$2 sm:$0xff]
    %s279 = scalar_lea.vmem [#allocation2], 50
    %v280 = vld [vmem:[%s279] ss:$2 sm:$0xff]
    %s281 = scalar_lea.vmem [#allocation2], 74
    %v282 = vld [vmem:[%s281] ss:$2 sm:$0xff]
    %s283 = scalar_lea.vmem [#allocation2], 98
    %v284 = vld [vmem:[%s283] ss:$2 sm:$0xff]
    %s285 = scalar_lea.vmem [#allocation2], 122
    %v286 = vld [vmem:[%s285] ss:$2 sm:$0xff]
    %s287 = scalar_lea.vmem [#allocation2], 146
    %v288 = vld [vmem:[%s287] ss:$2 sm:$0xff]
    %s289 = scalar_lea.vmem [#allocation2], 170
    %v290 = vld [vmem:[%s289] ss:$2 sm:$0xff]
    %s291 = scalar_lea.vmem [#allocation2], 194
    %v292 = vld [vmem:[%s291] ss:$2 sm:$0xff]
    %s293 = scalar_lea.vmem [#allocation2], 218
    %v294 = vld [vmem:[%s293] ss:$2 sm:$0xff]
    %s295 = scalar_lea.vmem [#allocation2], 242
    %v296 = vld [vmem:[%s295] ss:$2 sm:$0xff]
    %s297 = scalar_lea.vmem [#allocation2], 266
    %v298 = vld [vmem:[%s297] ss:$2 sm:$0xff]
    %s299 = scalar_lea.vmem [#allocation2], 290
    %v300 = vld [vmem:[%s299] ss:$2 sm:$0xff]
    %s301 = scalar_lea.vmem [#allocation2], 314
    %v302 = vld [vmem:[%s301] ss:$2 sm:$0xff]
    %s303 = scalar_lea.vmem [#allocation2], 338
    %v304 = vld [vmem:[%s303] ss:$2 sm:$0xff]
    %s305 = scalar_lea.vmem [#allocation2], 362
    %v306 = vld [vmem:[%s305] ss:$2 sm:$0xff]
    %v307 = vmax.f32 %v259, %v276
    %v308 = vmax.f32 %v260, %v278
    %v309 = vmax.f32 %v261, %v280
    %v310 = vmax.f32 %v262, %v282
    %v311 = vmax.f32 %v263, %v284
    %v312 = vmax.f32 %v264, %v286
    %v313 = vmax.f32 %v265, %v288
    %v314 = vmax.f32 %v266, %v290
    %v315 = vmax.f32 %v267, %v292
    %v316 = vmax.f32 %v268, %v294
    %v317 = vmax.f32 %v269, %v296
    %v318 = vmax.f32 %v270, %v298
    %v319 = vmax.f32 %v271, %v300
    %v320 = vmax.f32 %v272, %v302
    %v321 = vmax.f32 %v273, %v304
    %v322 = vmax.f32 %v274, %v306
    %v323 = vld [vmem:[%s4] sm:$0x1]
    %v324 = vld [vmem:[%s1] sm:$0xff]
    %v325 = vld [vmem:[%s1 + $0x8] sm:$0xff]
    %v326 = vperm.slane %v323, 0
    %v328 = vsel %vm163, %v307, 0
    %v331 = vsel %vm163, %v308, 0
    %v334 = vsel %vm163, %v309, 0
    %v337 = vsel %vm163, %v310, 0
    %v340 = vsel %vm163, %v311, 0
    %v343 = vsel %vm163, %v312, 0
    %v346 = vsel %vm163, %v313, 0
    %v349 = vsel %vm163, %v314, 0
    %v352 = vsel %vm163, %v315, 0
    %v355 = vsel %vm163, %v316, 0
    %v358 = vsel %vm163, %v317, 0
    %v361 = vsel %vm163, %v318, 0
    %v364 = vsel %vm163, %v319, 0
    %v367 = vsel %vm163, %v320, 0
    %v370 = vsel %vm163, %v321, 0
    %v373 = vsel %vm163, %v322, 0
    %375 = vmatpush.msra.mxu0 0.0
    %376 = vmatpush.msra.mxu0 0.0
    %377 = vmatpush.msra.mxu0 0.0
    %378 = vmatpush.msra.mxu0 0.0
    %379 = vmatpush.msra.mxu0 0.0
    %380 = vmatpush.msra.mxu0 0.0
    %381 = vmatpush.msra.mxu0 0.0
    %382 = vmatpush.msra.mxu0 0.0
    %383 = vmatpush.msra.mxu0 0.0
    %384 = vmatpush.msra.mxu0 0.0
    %385 = vmatpush.msra.mxu0 0.0
    %386 = vmatpush.msra.mxu0 0.0
    %387 = vmatpush.msra.mxu0 0.0
    %388 = vmatpush.msra.mxu0 0.0
    %389 = vmatpush.msra.mxu0 %v325
    %390 = vmatpush.msra.mxu0 %v324
    %391 = vmatmul.f32.gmra.mxu0 %v328
    %v392 = vpop.f32.mrf.mxu0
    %v393 = vadd.f32 %v326, %v392
    %394 = vmatmul.f32.gmra.mxu0 %v331
    %v395 = vpop.f32.mrf.mxu0
    %v396 = vadd.f32 %v326, %v395
    %397 = vmatmul.f32.gmra.mxu0 %v334
    %v398 = vpop.f32.mrf.mxu0
    %v399 = vadd.f32 %v326, %v398
    %400 = vmatmul.f32.gmra.mxu0 %v337
    %v401 = vpop.f32.mrf.mxu0
    %v402 = vadd.f32 %v326, %v401
    %403 = vmatmul.f32.gmra.mxu0 %v340
    %v404 = vpop.f32.mrf.mxu0
    %v405 = vadd.f32 %v326, %v404
    %406 = vmatmul.f32.gmra.mxu0 %v343
    %v407 = vpop.f32.mrf.mxu0
    %v408 = vadd.f32 %v326, %v407
    %409 = vmatmul.f32.gmra.mxu0 %v346
    %v410 = vpop.f32.mrf.mxu0
    %v411 = vadd.f32 %v326, %v410
    %412 = vmatmul.f32.gmra.mxu0 %v349
    %v413 = vpop.f32.mrf.mxu0
    %v414 = vadd.f32 %v326, %v413
    %415 = vmatmul.f32.gmra.mxu0 %v352
    %v416 = vpop.f32.mrf.mxu0
    %v417 = vadd.f32 %v326, %v416
    %418 = vmatmul.f32.gmra.mxu0 %v355
    %v419 = vpop.f32.mrf.mxu0
    %v420 = vadd.f32 %v326, %v419
    %421 = vmatmul.f32.gmra.mxu0 %v358
    %v422 = vpop.f32.mrf.mxu0
    %v423 = vadd.f32 %v326, %v422
    %424 = vmatmul.f32.gmra.mxu0 %v361
    %v425 = vpop.f32.mrf.mxu0
    %v426 = vadd.f32 %v326, %v425
    %427 = vmatmul.f32.gmra.mxu0 %v364
    %v428 = vpop.f32.mrf.mxu0
    %v429 = vadd.f32 %v326, %v428
    %430 = vmatmul.f32.gmra.mxu0 %v367
    %v431 = vpop.f32.mrf.mxu0
    %v432 = vadd.f32 %v326, %v431
    %433 = vmatmul.f32.gmra.mxu0 %v370
    %v434 = vpop.f32.mrf.mxu0
    %v435 = vadd.f32 %v326, %v434
    %436 = vmatmul.f32.gmra.mxu0 %v373
    %v437 = vpop.f32.mrf.mxu0
    %v438 = vadd.f32 %v326, %v437
    %439 = vdwg.mxu0
    %v440 = vmax.f32 %v393, 0.0
    %v441 = vmax.f32 %v396, 0.0
    %v442 = vmax.f32 %v399, 0.0
    %v443 = vmax.f32 %v402, 0.0
    %v444 = vmax.f32 %v405, 0.0
    %v445 = vmax.f32 %v408, 0.0
    %v446 = vmax.f32 %v411, 0.0
    %v447 = vmax.f32 %v414, 0.0
    %v448 = vmax.f32 %v417, 0.0
    %v449 = vmax.f32 %v420, 0.0
    %v450 = vmax.f32 %v423, 0.0
    %v451 = vmax.f32 %v426, 0.0
    %v452 = vmax.f32 %v429, 0.0
    %v453 = vmax.f32 %v432, 0.0
    %v454 = vmax.f32 %v435, 0.0
    %v455 = vmax.f32 %v438, 0.0
    %vm456 = vcmask 261120
    %457 = vst.msk [vmem:[#allocation3] sm:$0xff] %vm456, 0.0
    %vm458 = vcmask 254976
    %459 = vst.msk [vmem:[#allocation3 + $0x8] sm:$0x3] %vm458, 0.0
    %460 = vst.msk [vmem:[#allocation3 + $0xa0] sm:$0xff] %vm456, 0.0
    %461 = vst.msk [vmem:[#allocation3 + $0xa8] sm:$0x3] %vm458, 0.0
    %s462 = scalar_lea.vmem [#allocation3], 144
    %463 = vst.msk [vmem:[%s462] sm:$0xff] %vm456, 0.0
    %464 = vst.msk [vmem:[%s462 + $0x8] sm:$0x3] %vm458, 0.0
    %465 = vst.msk [vmem:[%s462 + $0xa0] sm:$0xff] %vm456, 0.0
    %466 = vst.msk [vmem:[%s462 + $0xa8] sm:$0x3] %vm458, 0.0
    %vm467 = vcmask 253952
    %468 = vst.msk [vmem:[#allocation3] sm:$0x1] %vm467, 0.0
    %469 = vst.msk [vmem:[#allocation3 + $0x10] sm:$0x1] %vm467, 0.0
    %470 = vst.msk [vmem:[#allocation3 + $0x20] sm:$0x1] %vm467, 0.0
    %471 = vst.msk [vmem:[#allocation3 + $0x30] sm:$0x1] %vm467, 0.0
    %472 = vst.msk [vmem:[#allocation3 + $0x40] sm:$0x1] %vm467, 0.0
    %473 = vst.msk [vmem:[#allocation3 + $0x50] sm:$0x1] %vm467, 0.0
    %474 = vst.msk [vmem:[#allocation3 + $0x60] sm:$0x1] %vm467, 0.0
    %475 = vst.msk [vmem:[#allocation3 + $0x70] sm:$0x1] %vm467, 0.0
    %476 = vst.msk [vmem:[#allocation3 + $0x80] sm:$0x1] %vm467, 0.0
    %477 = vst.msk [vmem:[#allocation3 + $0x90] sm:$0x1] %vm467, 0.0
    %478 = vst.msk [vmem:[#allocation3 + $0xa0] sm:$0x1] %vm467, 0.0
    %479 = vst.msk [vmem:[#allocation3 + $0xb0] sm:$0x1] %vm467, 0.0
    %480 = vst.msk [vmem:[#allocation3 + $0xc0] sm:$0x1] %vm467, 0.0
    %481 = vst.msk [vmem:[#allocation3 + $0xd0] sm:$0x1] %vm467, 0.0
    %482 = vst.msk [vmem:[#allocation3 + $0xe0] sm:$0x1] %vm467, 0.0
    %483 = vst.msk [vmem:[#allocation3 + $0xf0] sm:$0x1] %vm467, 0.0
    %484 = vst.msk [vmem:[#allocation3 + $0x100] sm:$0x1] %vm467, 0.0
    %485 = vst.msk [vmem:[#allocation3 + $0x110] sm:$0x1] %vm467, 0.0
    %486 = vst.msk [vmem:[#allocation3 + $0x120] sm:$0x1] %vm467, 0.0
    %487 = vst.msk [vmem:[#allocation3 + $0x130] sm:$0x1] %vm467, 0.0
    %488 = vst.msk [vmem:[#allocation3 + $0x9] sm:$0x1] %vm467, 0.0
    %489 = vst.msk [vmem:[#allocation3 + $0x19] sm:$0x1] %vm467, 0.0
    %490 = vst.msk [vmem:[#allocation3 + $0x29] sm:$0x1] %vm467, 0.0
    %491 = vst.msk [vmem:[#allocation3 + $0x39] sm:$0x1] %vm467, 0.0
    %492 = vst.msk [vmem:[#allocation3 + $0x49] sm:$0x1] %vm467, 0.0
    %493 = vst.msk [vmem:[#allocation3 + $0x59] sm:$0x1] %vm467, 0.0
    %494 = vst.msk [vmem:[#allocation3 + $0x69] sm:$0x1] %vm467, 0.0
    %495 = vst.msk [vmem:[#allocation3 + $0x79] sm:$0x1] %vm467, 0.0
    %496 = vst.msk [vmem:[#allocation3 + $0x89] sm:$0x1] %vm467, 0.0
    %497 = vst.msk [vmem:[#allocation3 + $0x99] sm:$0x1] %vm467, 0.0
    %498 = vst.msk [vmem:[#allocation3 + $0xa9] sm:$0x1] %vm467, 0.0
    %499 = vst.msk [vmem:[#allocation3 + $0xb9] sm:$0x1] %vm467, 0.0
    %500 = vst.msk [vmem:[#allocation3 + $0xc9] sm:$0x1] %vm467, 0.0
    %501 = vst.msk [vmem:[#allocation3 + $0xd9] sm:$0x1] %vm467, 0.0
    %502 = vst.msk [vmem:[#allocation3 + $0xe9] sm:$0x1] %vm467, 0.0
    %503 = vst.msk [vmem:[#allocation3 + $0xf9] sm:$0x1] %vm467, 0.0
    %504 = vst.msk [vmem:[#allocation3 + $0x109] sm:$0x1] %vm467, 0.0
    %505 = vst.msk [vmem:[#allocation3 + $0x119] sm:$0x1] %vm467, 0.0
    %506 = vst.msk [vmem:[#allocation3 + $0x129] sm:$0x1] %vm467, 0.0
    %507 = vst.msk [vmem:[#allocation3 + $0x139] sm:$0x1] %vm467, 0.0
    %s508 = scalar_lea.vmem [#allocation3], 16
    %509 = vst.msk [vmem:[%s508 + $0x1] sm:$0xff] %vm456, %v440
    %510 = vst.msk [vmem:[%s508 + $0x11] sm:$0xff] %vm456, %v441
    %511 = vst.msk [vmem:[%s508 + $0x21] sm:$0xff] %vm456, %v442
    %512 = vst.msk [vmem:[%s508 + $0x31] sm:$0xff] %vm456, %v443
    %513 = vst.msk [vmem:[%s508 + $0x41] sm:$0xff] %vm456, %v444
    %514 = vst.msk [vmem:[%s508 + $0x51] sm:$0xff] %vm456, %v445
    %515 = vst.msk [vmem:[%s508 + $0x61] sm:$0xff] %vm456, %v446
    %516 = vst.msk [vmem:[%s508 + $0x71] sm:$0xff] %vm456, %v447
    %517 = vst.msk [vmem:[%s508 + $0xa1] sm:$0xff] %vm456, %v448
    %518 = vst.msk [vmem:[%s508 + $0xb1] sm:$0xff] %vm456, %v449
    %519 = vst.msk [vmem:[%s508 + $0xc1] sm:$0xff] %vm456, %v450
    %520 = vst.msk [vmem:[%s508 + $0xd1] sm:$0xff] %vm456, %v451
    %521 = vst.msk [vmem:[%s508 + $0xe1] sm:$0xff] %vm456, %v452
    %522 = vst.msk [vmem:[%s508 + $0xf1] sm:$0xff] %vm456, %v453
    %523 = vst.msk [vmem:[%s508 + $0x101] sm:$0xff] %vm456, %v454
    %524 = vst.msk [vmem:[%s508 + $0x111] sm:$0xff] %vm456, %v455
    %v525 = vld [vmem:[%s4 + $0x1] sm:$0x1]
    %v526 = vld [vmem:[#allocation3] sm:$0xff]
    %v527 = vld [vmem:[#allocation3 + $0x10] sm:$0xff]
    %v528 = vld [vmem:[#allocation3 + $0x20] sm:$0xff]
    %v529 = vld [vmem:[#allocation3 + $0x30] sm:$0xff]
    %v530 = vld [vmem:[#allocation3 + $0x40] sm:$0xff]
    %v531 = vld [vmem:[#allocation3 + $0x50] sm:$0xff]
    %v532 = vld [vmem:[#allocation3 + $0x60] sm:$0xff]
    %v533 = vld [vmem:[#allocation3 + $0x70] sm:$0xff]
    %v534 = vld [vmem:[#allocation3 + $0xa0] sm:$0xff]
    %v535 = vld [vmem:[#allocation3 + $0xb0] sm:$0xff]
    %v536 = vld [vmem:[#allocation3 + $0xc0] sm:$0xff]
    %v537 = vld [vmem:[#allocation3 + $0xd0] sm:$0xff]
    %v538 = vld [vmem:[#allocation3 + $0xe0] sm:$0xff]
    %v539 = vld [vmem:[#allocation3 + $0xf0] sm:$0xff]
    %v540 = vld [vmem:[#allocation3 + $0x100] sm:$0xff]
    %v541 = vld [vmem:[#allocation3 + $0x110] sm:$0xff]
    %v542 = vld [vmem:[%s2] sm:$0xff]
    %v543 = vld [vmem:[%s2 + $0x8] sm:$0xff]
    %v544 = vld [vmem:[%s2 + $0x10] sm:$0xff]
    %v545 = vld [vmem:[%s2 + $0x18] sm:$0xff]
    %v546 = vld [vmem:[#allocation3 + $0x1] sm:$0xff]
    %v547 = vld [vmem:[#allocation3 + $0x11] sm:$0xff]
    %v548 = vld [vmem:[#allocation3 + $0x21] sm:$0xff]
    %v549 = vld [vmem:[#allocation3 + $0x31] sm:$0xff]
    %v550 = vld [vmem:[#allocation3 + $0x41] sm:$0xff]
    %v551 = vld [vmem:[#allocation3 + $0x51] sm:$0xff]
    %v552 = vld [vmem:[#allocation3 + $0x61] sm:$0xff]
    %v553 = vld [vmem:[#allocation3 + $0x71] sm:$0xff]
    %v554 = vld [vmem:[#allocation3 + $0xa1] sm:$0xff]
    %v555 = vld [vmem:[#allocation3 + $0xb1] sm:$0xff]
    %v556 = vld [vmem:[#allocation3 + $0xc1] sm:$0xff]
    %v557 = vld [vmem:[#allocation3 + $0xd1] sm:$0xff]
    %v558 = vld [vmem:[#allocation3 + $0xe1] sm:$0xff]
    %v559 = vld [vmem:[#allocation3 + $0xf1] sm:$0xff]
    %v560 = vld [vmem:[#allocation3 + $0x101] sm:$0xff]
    %v561 = vld [vmem:[#allocation3 + $0x111] sm:$0xff]
    %s562 = scalar_lea.vmem %s2, 32
    %v563 = vld [vmem:[%s562] sm:$0xff]
    %v564 = vld [vmem:[%s562 + $0x8] sm:$0xff]
    %v565 = vld [vmem:[%s562 + $0x10] sm:$0xff]
    %v566 = vld [vmem:[%s562 + $0x18] sm:$0xff]
    %v568 = vsel %vm456, %v546, 0
    %v571 = vsel %vm456, %v547, 0
    %v574 = vsel %vm456, %v548, 0
    %v577 = vsel %vm456, %v549, 0
    %v580 = vsel %vm456, %v550, 0
    %v583 = vsel %vm456, %v551, 0
    %v586 = vsel %vm456, %v552, 0
    %v589 = vsel %vm456, %v553, 0
    %v592 = vsel %vm456, %v554, 0
    %v595 = vsel %vm456, %v555, 0
    %v598 = vsel %vm456, %v556, 0
    %v601 = vsel %vm456, %v557, 0
    %v604 = vsel %vm456, %v558, 0
    %v607 = vsel %vm456, %v559, 0
    %v610 = vsel %vm456, %v560, 0
    %v613 = vsel %vm456, %v561, 0
    %615 = vmatpush.msra.mxu0 0.0
    %616 = vmatpush.msra.mxu0 0.0
    %617 = vmatpush.msra.mxu0 0.0
    %618 = vmatpush.msra.mxu0 0.0
    %619 = vmatpush.msra.mxu0 0.0
    %620 = vmatpush.msra.mxu0 0.0
    %621 = vmatpush.msra.mxu0 0.0
    %622 = vmatpush.msra.mxu0 0.0
    %623 = vmatpush.msra.mxu0 0.0
    %624 = vmatpush.msra.mxu0 0.0
    %625 = vmatpush.msra.mxu0 0.0
    %626 = vmatpush.msra.mxu0 0.0
    %627 = vmatpush.msra.mxu0 %v566
    %628 = vmatpush.msra.mxu0 %v565
    %629 = vmatpush.msra.mxu0 %v564
    %630 = vmatpush.msra.mxu0 %v563
    %631 = vmatmul.f32.gmra.mxu0 %v568
    %v632 = vpop.f32.mrf.mxu0
    %v633 = vadd.f32 0.0, %v632
    %634 = vmatmul.f32.gmra.mxu0 %v571
    %v635 = vpop.f32.mrf.mxu0
    %v636 = vadd.f32 0.0, %v635
    %637 = vmatmul.f32.gmra.mxu0 %v574
    %v638 = vpop.f32.mrf.mxu0
    %v639 = vadd.f32 0.0, %v638
    %640 = vmatmul.f32.gmra.mxu0 %v577
    %v641 = vpop.f32.mrf.mxu0
    %v642 = vadd.f32 0.0, %v641
    %643 = vmatmul.f32.gmra.mxu0 %v580
    %v644 = vpop.f32.mrf.mxu0
    %v645 = vadd.f32 0.0, %v644
    %646 = vmatmul.f32.gmra.mxu0 %v583
    %v647 = vpop.f32.mrf.mxu0
    %v648 = vadd.f32 0.0, %v647
    %649 = vmatmul.f32.gmra.mxu0 %v586
    %v650 = vpop.f32.mrf.mxu0
    %v651 = vadd.f32 0.0, %v650
    %652 = vmatmul.f32.gmra.mxu0 %v589
    %v653 = vpop.f32.mrf.mxu0
    %v654 = vadd.f32 0.0, %v653
    %655 = vmatmul.f32.gmra.mxu0 %v592
    %v656 = vpop.f32.mrf.mxu0
    %v657 = vadd.f32 0.0, %v656
    %658 = vmatmul.f32.gmra.mxu0 %v595
    %v659 = vpop.f32.mrf.mxu0
    %v660 = vadd.f32 0.0, %v659
    %661 = vmatmul.f32.gmra.mxu0 %v598
    %v662 = vpop.f32.mrf.mxu0
    %v663 = vadd.f32 0.0, %v662
    %664 = vmatmul.f32.gmra.mxu0 %v601
    %v665 = vpop.f32.mrf.mxu0
    %v666 = vadd.f32 0.0, %v665
    %667 = vmatmul.f32.gmra.mxu0 %v604
    %v668 = vpop.f32.mrf.mxu0
    %v669 = vadd.f32 0.0, %v668
    %670 = vmatmul.f32.gmra.mxu0 %v607
    %v671 = vpop.f32.mrf.mxu0
    %v672 = vadd.f32 0.0, %v671
    %673 = vmatmul.f32.gmra.mxu0 %v610
    %v674 = vpop.f32.mrf.mxu0
    %v675 = vadd.f32 0.0, %v674
    %676 = vmatmul.f32.gmra.mxu0 %v613
    %v677 = vpop.f32.mrf.mxu0
    %v678 = vadd.f32 0.0, %v677
    %679 = vdwg.mxu0
    %v681 = vsel %vm456, %v526, 0
    %v684 = vsel %vm456, %v527, 0
    %v687 = vsel %vm456, %v528, 0
    %v690 = vsel %vm456, %v529, 0
    %v693 = vsel %vm456, %v530, 0
    %v696 = vsel %vm456, %v531, 0
    %v699 = vsel %vm456, %v532, 0
    %v702 = vsel %vm456, %v533, 0
    %v705 = vsel %vm456, %v534, 0
    %v708 = vsel %vm456, %v535, 0
    %v711 = vsel %vm456, %v536, 0
    %v714 = vsel %vm456, %v537, 0
    %v717 = vsel %vm456, %v538, 0
    %v720 = vsel %vm456, %v539, 0
    %v723 = vsel %vm456, %v540, 0
    %v726 = vsel %vm456, %v541, 0
    %728 = vmatpush.msra.mxu0 0.0
    %729 = vmatpush.msra.mxu0 0.0
    %730 = vmatpush.msra.mxu0 0.0
    %731 = vmatpush.msra.mxu0 0.0
    %732 = vmatpush.msra.mxu0 0.0
    %733 = vmatpush.msra.mxu0 0.0
    %734 = vmatpush.msra.mxu0 0.0
    %735 = vmatpush.msra.mxu0 0.0
    %736 = vmatpush.msra.mxu0 0.0
    %737 = vmatpush.msra.mxu0 0.0
    %738 = vmatpush.msra.mxu0 0.0
    %739 = vmatpush.msra.mxu0 0.0
    %740 = vmatpush.msra.mxu0 %v545
    %741 = vmatpush.msra.mxu0 %v544
    %742 = vmatpush.msra.mxu0 %v543
    %743 = vmatpush.msra.mxu0 %v542
    %744 = vmatmul.f32.gmra.mxu0 %v681
    %v745 = vpop.f32.mrf.mxu0
    %v746 = vadd.f32 %v633, %v745
    %747 = vmatmul.f32.gmra.mxu0 %v684
    %v748 = vpop.f32.mrf.mxu0
    %v749 = vadd.f32 %v636, %v748
    %750 = vmatmul.f32.gmra.mxu0 %v687
    %v751 = vpop.f32.mrf.mxu0
    %v752 = vadd.f32 %v639, %v751
    %753 = vmatmul.f32.gmra.mxu0 %v690
    %v754 = vpop.f32.mrf.mxu0
    %v755 = vadd.f32 %v642, %v754
    %756 = vmatmul.f32.gmra.mxu0 %v693
    %v757 = vpop.f32.mrf.mxu0
    %v758 = vadd.f32 %v645, %v757
    %759 = vmatmul.f32.gmra.mxu0 %v696
    %v760 = vpop.f32.mrf.mxu0
    %v761 = vadd.f32 %v648, %v760
    %762 = vmatmul.f32.gmra.mxu0 %v699
    %v763 = vpop.f32.mrf.mxu0
    %v764 = vadd.f32 %v651, %v763
    %765 = vmatmul.f32.gmra.mxu0 %v702
    %v766 = vpop.f32.mrf.mxu0
    %v767 = vadd.f32 %v654, %v766
    %768 = vmatmul.f32.gmra.mxu0 %v705
    %v769 = vpop.f32.mrf.mxu0
    %v770 = vadd.f32 %v657, %v769
    %771 = vmatmul.f32.gmra.mxu0 %v708
    %v772 = vpop.f32.mrf.mxu0
    %v773 = vadd.f32 %v660, %v772
    %774 = vmatmul.f32.gmra.mxu0 %v711
    %v775 = vpop.f32.mrf.mxu0
    %v776 = vadd.f32 %v663, %v775
    %777 = vmatmul.f32.gmra.mxu0 %v714
    %v778 = vpop.f32.mrf.mxu0
    %v779 = vadd.f32 %v666, %v778
    %780 = vmatmul.f32.gmra.mxu0 %v717
    %v781 = vpop.f32.mrf.mxu0
    %v782 = vadd.f32 %v669, %v781
    %783 = vmatmul.f32.gmra.mxu0 %v720
    %v784 = vpop.f32.mrf.mxu0
    %v785 = vadd.f32 %v672, %v784
    %786 = vmatmul.f32.gmra.mxu0 %v723
    %v787 = vpop.f32.mrf.mxu0
    %v788 = vadd.f32 %v675, %v787
    %789 = vmatmul.f32.gmra.mxu0 %v726
    %v790 = vpop.f32.mrf.mxu0
    %v791 = vadd.f32 %v678, %v790
    %792 = vdwg.mxu0
    %v793 = vld [vmem:[#allocation3 + $0x2] sm:$0xff]
    %v794 = vld [vmem:[#allocation3 + $0x12] sm:$0xff]
    %v795 = vld [vmem:[#allocation3 + $0x22] sm:$0xff]
    %v796 = vld [vmem:[#allocation3 + $0x32] sm:$0xff]
    %v797 = vld [vmem:[#allocation3 + $0x42] sm:$0xff]
    %v798 = vld [vmem:[#allocation3 + $0x52] sm:$0xff]
    %v799 = vld [vmem:[#allocation3 + $0x62] sm:$0xff]
    %v800 = vld [vmem:[#allocation3 + $0x72] sm:$0xff]
    %v801 = vld [vmem:[#allocation3 + $0xa2] sm:$0xff]
    %v802 = vld [vmem:[#allocation3 + $0xb2] sm:$0xff]
    %v803 = vld [vmem:[#allocation3 + $0xc2] sm:$0xff]
    %v804 = vld [vmem:[#allocation3 + $0xd2] sm:$0xff]
    %v805 = vld [vmem:[#allocation3 + $0xe2] sm:$0xff]
    %v806 = vld [vmem:[#allocation3 + $0xf2] sm:$0xff]
    %v807 = vld [vmem:[#allocation3 + $0x102] sm:$0xff]
    %v808 = vld [vmem:[#allocation3 + $0x112] sm:$0xff]
    %s809 = scalar_lea.vmem %s2, 64
    %v810 = vld [vmem:[%s809] sm:$0xff]
    %v811 = vld [vmem:[%s809 + $0x8] sm:$0xff]
    %v812 = vld [vmem:[%s809 + $0x10] sm:$0xff]
    %v813 = vld [vmem:[%s809 + $0x18] sm:$0xff]
    %v815 = vsel %vm456, %v793, 0
    %v818 = vsel %vm456, %v794, 0
    %v821 = vsel %vm456, %v795, 0
    %v824 = vsel %vm456, %v796, 0
    %v827 = vsel %vm456, %v797, 0
    %v830 = vsel %vm456, %v798, 0
    %v833 = vsel %vm456, %v799, 0
    %v836 = vsel %vm456, %v800, 0
    %v839 = vsel %vm456, %v801, 0
    %v842 = vsel %vm456, %v802, 0
    %v845 = vsel %vm456, %v803, 0
    %v848 = vsel %vm456, %v804, 0
    %v851 = vsel %vm456, %v805, 0
    %v854 = vsel %vm456, %v806, 0
    %v857 = vsel %vm456, %v807, 0
    %v860 = vsel %vm456, %v808, 0
    %862 = vmatpush.msra.mxu0 0.0
    %863 = vmatpush.msra.mxu0 0.0
    %864 = vmatpush.msra.mxu0 0.0
    %865 = vmatpush.msra.mxu0 0.0
    %866 = vmatpush.msra.mxu0 0.0
    %867 = vmatpush.msra.mxu0 0.0
    %868 = vmatpush.msra.mxu0 0.0
    %869 = vmatpush.msra.mxu0 0.0
    %870 = vmatpush.msra.mxu0 0.0
    %871 = vmatpush.msra.mxu0 0.0
    %872 = vmatpush.msra.mxu0 0.0
    %873 = vmatpush.msra.mxu0 0.0
    %874 = vmatpush.msra.mxu0 %v813
    %875 = vmatpush.msra.mxu0 %v812
    %876 = vmatpush.msra.mxu0 %v811
    %877 = vmatpush.msra.mxu0 %v810
    %878 = vmatmul.f32.gmra.mxu0 %v815
    %v879 = vpop.f32.mrf.mxu0
    %v880 = vadd.f32 0.0, %v879
    %881 = vmatmul.f32.gmra.mxu0 %v818
    %v882 = vpop.f32.mrf.mxu0
    %v883 = vadd.f32 0.0, %v882
    %884 = vmatmul.f32.gmra.mxu0 %v821
    %v885 = vpop.f32.mrf.mxu0
    %v886 = vadd.f32 0.0, %v885
    %887 = vmatmul.f32.gmra.mxu0 %v824
    %v888 = vpop.f32.mrf.mxu0
    %v889 = vadd.f32 0.0, %v888
    %890 = vmatmul.f32.gmra.mxu0 %v827
    %v891 = vpop.f32.mrf.mxu0
    %v892 = vadd.f32 0.0, %v891
    %893 = vmatmul.f32.gmra.mxu0 %v830
    %v894 = vpop.f32.mrf.mxu0
    %v895 = vadd.f32 0.0, %v894
    %896 = vmatmul.f32.gmra.mxu0 %v833
    %v897 = vpop.f32.mrf.mxu0
    %v898 = vadd.f32 0.0, %v897
    %899 = vmatmul.f32.gmra.mxu0 %v836
    %v900 = vpop.f32.mrf.mxu0
    %v901 = vadd.f32 0.0, %v900
    %902 = vmatmul.f32.gmra.mxu0 %v839
    %v903 = vpop.f32.mrf.mxu0
    %v904 = vadd.f32 0.0, %v903
    %905 = vmatmul.f32.gmra.mxu0 %v842
    %v906 = vpop.f32.mrf.mxu0
    %v907 = vadd.f32 0.0, %v906
    %908 = vmatmul.f32.gmra.mxu0 %v845
    %v909 = vpop.f32.mrf.mxu0
    %v910 = vadd.f32 0.0, %v909
    %911 = vmatmul.f32.gmra.mxu0 %v848
    %v912 = vpop.f32.mrf.mxu0
    %v913 = vadd.f32 0.0, %v912
    %914 = vmatmul.f32.gmra.mxu0 %v851
    %v915 = vpop.f32.mrf.mxu0
    %v916 = vadd.f32 0.0, %v915
    %917 = vmatmul.f32.gmra.mxu0 %v854
    %v918 = vpop.f32.mrf.mxu0
    %v919 = vadd.f32 0.0, %v918
    %920 = vmatmul.f32.gmra.mxu0 %v857
    %v921 = vpop.f32.mrf.mxu0
    %v922 = vadd.f32 0.0, %v921
    %923 = vmatmul.f32.gmra.mxu0 %v860
    %v924 = vpop.f32.mrf.mxu0
    %v925 = vadd.f32 0.0, %v924
    %926 = vdwg.mxu0
    %v927 = vadd.f32 %v746, %v880
    %v928 = vadd.f32 %v749, %v883
    %v929 = vadd.f32 %v752, %v886
    %v930 = vadd.f32 %v755, %v889
    %v931 = vadd.f32 %v758, %v892
    %v932 = vadd.f32 %v761, %v895
    %v933 = vadd.f32 %v764, %v898
    %v934 = vadd.f32 %v767, %v901
    %v935 = vadd.f32 %v770, %v904
    %v936 = vadd.f32 %v773, %v907
    %v937 = vadd.f32 %v776, %v910
    %v938 = vadd.f32 %v779, %v913
    %v939 = vadd.f32 %v782, %v916
    %v940 = vadd.f32 %v785, %v919
    %v941 = vadd.f32 %v788, %v922
    %v942 = vadd.f32 %v791, %v925
    %v943 = vld [vmem:[%s508] sm:$0xff]
    %v944 = vld [vmem:[%s508 + $0x10] sm:$0xff]
    %v945 = vld [vmem:[%s508 + $0x20] sm:$0xff]
    %v946 = vld [vmem:[%s508 + $0x30] sm:$0xff]
    %v947 = vld [vmem:[%s508 + $0x40] sm:$0xff]
    %v948 = vld [vmem:[%s508 + $0x50] sm:$0xff]
    %v949 = vld [vmem:[%s508 + $0x60] sm:$0xff]
    %v950 = vld [vmem:[%s508 + $0x70] sm:$0xff]
    %v951 = vld [vmem:[%s508 + $0xa0] sm:$0xff]
    %v952 = vld [vmem:[%s508 + $0xb0] sm:$0xff]
    %v953 = vld [vmem:[%s508 + $0xc0] sm:$0xff]
    %v954 = vld [vmem:[%s508 + $0xd0] sm:$0xff]
    %v955 = vld [vmem:[%s508 + $0xe0] sm:$0xff]
    %v956 = vld [vmem:[%s508 + $0xf0] sm:$0xff]
    %v957 = vld [vmem:[%s508 + $0x100] sm:$0xff]
    %v958 = vld [vmem:[%s508 + $0x110] sm:$0xff]
    %s959 = scalar_lea.vmem %s2, 96
    %v960 = vld [vmem:[%s959] sm:$0xff]
    %v961 = vld [vmem:[%s959 + $0x8] sm:$0xff]
    %v962 = vld [vmem:[%s959 + $0x10] sm:$0xff]
    %v963 = vld [vmem:[%s959 + $0x18] sm:$0xff]
    %v965 = vsel %vm456, %v943, 0
    %v968 = vsel %vm456, %v944, 0
    %v971 = vsel %vm456, %v945, 0
    %v974 = vsel %vm456, %v946, 0
    %v977 = vsel %vm456, %v947, 0
    %v980 = vsel %vm456, %v948, 0
    %v983 = vsel %vm456, %v949, 0
    %v986 = vsel %vm456, %v950, 0
    %v989 = vsel %vm456, %v951, 0
    %v992 = vsel %vm456, %v952, 0
    %v995 = vsel %vm456, %v953, 0
    %v998 = vsel %vm456, %v954, 0
    %v1001 = vsel %vm456, %v955, 0
    %v1004 = vsel %vm456, %v956, 0
    %v1007 = vsel %vm456, %v957, 0
    %v1010 = vsel %vm456, %v958, 0
    %1012 = vmatpush.msra.mxu0 0.0
    %1013 = vmatpush.msra.mxu0 0.0
    %1014 = vmatpush.msra.mxu0 0.0
    %1015 = vmatpush.msra.mxu0 0.0
    %1016 = vmatpush.msra.mxu0 0.0
    %1017 = vmatpush.msra.mxu0 0.0
    %1018 = vmatpush.msra.mxu0 0.0
    %1019 = vmatpush.msra.mxu0 0.0
    %1020 = vmatpush.msra.mxu0 0.0
    %1021 = vmatpush.msra.mxu0 0.0
    %1022 = vmatpush.msra.mxu0 0.0
    %1023 = vmatpush.msra.mxu0 0.0
    %1024 = vmatpush.msra.mxu0 %v963
    %1025 = vmatpush.msra.mxu0 %v962
    %1026 = vmatpush.msra.mxu0 %v961
    %1027 = vmatpush.msra.mxu0 %v960
    %1028 = vmatmul.f32.gmra.mxu0 %v965
    %v1029 = vpop.f32.mrf.mxu0
    %v1030 = vadd.f32 0.0, %v1029
    %1031 = vmatmul.f32.gmra.mxu0 %v968
    %v1032 = vpop.f32.mrf.mxu0
    %v1033 = vadd.f32 0.0, %v1032
    %1034 = vmatmul.f32.gmra.mxu0 %v971
    %v1035 = vpop.f32.mrf.mxu0
    %v1036 = vadd.f32 0.0, %v1035
    %1037 = vmatmul.f32.gmra.mxu0 %v974
    %v1038 = vpop.f32.mrf.mxu0
    %v1039 = vadd.f32 0.0, %v1038
    %1040 = vmatmul.f32.gmra.mxu0 %v977
    %v1041 = vpop.f32.mrf.mxu0
    %v1042 = vadd.f32 0.0, %v1041
    %1043 = vmatmul.f32.gmra.mxu0 %v980
    %v1044 = vpop.f32.mrf.mxu0
    %v1045 = vadd.f32 0.0, %v1044
    %1046 = vmatmul.f32.gmra.mxu0 %v983
    %v1047 = vpop.f32.mrf.mxu0
    %v1048 = vadd.f32 0.0, %v1047
    %1049 = vmatmul.f32.gmra.mxu0 %v986
    %v1050 = vpop.f32.mrf.mxu0
    %v1051 = vadd.f32 0.0, %v1050
    %1052 = vmatmul.f32.gmra.mxu0 %v989
    %v1053 = vpop.f32.mrf.mxu0
    %v1054 = vadd.f32 0.0, %v1053
    %1055 = vmatmul.f32.gmra.mxu0 %v992
    %v1056 = vpop.f32.mrf.mxu0
    %v1057 = vadd.f32 0.0, %v1056
    %1058 = vmatmul.f32.gmra.mxu0 %v995
    %v1059 = vpop.f32.mrf.mxu0
    %v1060 = vadd.f32 0.0, %v1059
    %1061 = vmatmul.f32.gmra.mxu0 %v998
    %v1062 = vpop.f32.mrf.mxu0
    %v1063 = vadd.f32 0.0, %v1062
    %1064 = vmatmul.f32.gmra.mxu0 %v1001
    %v1065 = vpop.f32.mrf.mxu0
    %v1066 = vadd.f32 0.0, %v1065
    %1067 = vmatmul.f32.gmra.mxu0 %v1004
    %v1068 = vpop.f32.mrf.mxu0
    %v1069 = vadd.f32 0.0, %v1068
    %1070 = vmatmul.f32.gmra.mxu0 %v1007
    %v1071 = vpop.f32.mrf.mxu0
    %v1072 = vadd.f32 0.0, %v1071
    %1073 = vmatmul.f32.gmra.mxu0 %v1010
    %v1074 = vpop.f32.mrf.mxu0
    %v1075 = vadd.f32 0.0, %v1074
    %1076 = vdwg.mxu0
    %v1077 = vadd.f32 %v927, %v1030
    %v1078 = vadd.f32 %v928, %v1033
    %v1079 = vadd.f32 %v929, %v1036
    %v1080 = vadd.f32 %v930, %v1039
    %v1081 = vadd.f32 %v931, %v1042
    %v1082 = vadd.f32 %v932, %v1045
    %v1083 = vadd.f32 %v933, %v1048
    %v1084 = vadd.f32 %v934, %v1051
    %v1085 = vadd.f32 %v935, %v1054
    %v1086 = vadd.f32 %v936, %v1057
    %v1087 = vadd.f32 %v937, %v1060
    %v1088 = vadd.f32 %v938, %v1063
    %v1089 = vadd.f32 %v939, %v1066
    %v1090 = vadd.f32 %v940, %v1069
    %v1091 = vadd.f32 %v941, %v1072
    %v1092 = vadd.f32 %v942, %v1075
    %v1093 = vld [vmem:[%s508 + $0x1] sm:$0xff]
    %v1094 = vld [vmem:[%s508 + $0x11] sm:$0xff]
    %v1095 = vld [vmem:[%s508 + $0x21] sm:$0xff]
    %v1096 = vld [vmem:[%s508 + $0x31] sm:$0xff]
    %v1097 = vld [vmem:[%s508 + $0x41] sm:$0xff]
    %v1098 = vld [vmem:[%s508 + $0x51] sm:$0xff]
    %v1099 = vld [vmem:[%s508 + $0x61] sm:$0xff]
    %v1100 = vld [vmem:[%s508 + $0x71] sm:$0xff]
    %v1101 = vld [vmem:[%s508 + $0xa1] sm:$0xff]
    %v1102 = vld [vmem:[%s508 + $0xb1] sm:$0xff]
    %v1103 = vld [vmem:[%s508 + $0xc1] sm:$0xff]
    %v1104 = vld [vmem:[%s508 + $0xd1] sm:$0xff]
    %v1105 = vld [vmem:[%s508 + $0xe1] sm:$0xff]
    %v1106 = vld [vmem:[%s508 + $0xf1] sm:$0xff]
    %v1107 = vld [vmem:[%s508 + $0x101] sm:$0xff]
    %v1108 = vld [vmem:[%s508 + $0x111] sm:$0xff]
    %s1109 = scalar_lea.vmem %s2, 128
    %v1110 = vld [vmem:[%s1109] sm:$0xff]
    %v1111 = vld [vmem:[%s1109 + $0x8] sm:$0xff]
    %v1112 = vld [vmem:[%s1109 + $0x10] sm:$0xff]
    %v1113 = vld [vmem:[%s1109 + $0x18] sm:$0xff]
    %v1115 = vsel %vm456, %v1093, 0
    %v1118 = vsel %vm456, %v1094, 0
    %v1121 = vsel %vm456, %v1095, 0
    %v1124 = vsel %vm456, %v1096, 0
    %v1127 = vsel %vm456, %v1097, 0
    %v1130 = vsel %vm456, %v1098, 0
    %v1133 = vsel %vm456, %v1099, 0
    %v1136 = vsel %vm456, %v1100, 0
    %v1139 = vsel %vm456, %v1101, 0
    %v1142 = vsel %vm456, %v1102, 0
    %v1145 = vsel %vm456, %v1103, 0
    %v1148 = vsel %vm456, %v1104, 0
    %v1151 = vsel %vm456, %v1105, 0
    %v1154 = vsel %vm456, %v1106, 0
    %v1157 = vsel %vm456, %v1107, 0
    %v1160 = vsel %vm456, %v1108, 0
    %1162 = vmatpush.msra.mxu0 0.0
    %1163 = vmatpush.msra.mxu0 0.0
    %1164 = vmatpush.msra.mxu0 0.0
    %1165 = vmatpush.msra.mxu0 0.0
    %1166 = vmatpush.msra.mxu0 0.0
    %1167 = vmatpush.msra.mxu0 0.0
    %1168 = vmatpush.msra.mxu0 0.0
    %1169 = vmatpush.msra.mxu0 0.0
    %1170 = vmatpush.msra.mxu0 0.0
    %1171 = vmatpush.msra.mxu0 0.0
    %1172 = vmatpush.msra.mxu0 0.0
    %1173 = vmatpush.msra.mxu0 0.0
    %1174 = vmatpush.msra.mxu0 %v1113
    %1175 = vmatpush.msra.mxu0 %v1112
    %1176 = vmatpush.msra.mxu0 %v1111
    %1177 = vmatpush.msra.mxu0 %v1110
    %1178 = vmatmul.f32.gmra.mxu0 %v1115
    %v1179 = vpop.f32.mrf.mxu0
    %v1180 = vadd.f32 0.0, %v1179
    %1181 = vmatmul.f32.gmra.mxu0 %v1118
    %v1182 = vpop.f32.mrf.mxu0
    %v1183 = vadd.f32 0.0, %v1182
    %1184 = vmatmul.f32.gmra.mxu0 %v1121
    %v1185 = vpop.f32.mrf.mxu0
    %v1186 = vadd.f32 0.0, %v1185
    %1187 = vmatmul.f32.gmra.mxu0 %v1124
    %v1188 = vpop.f32.mrf.mxu0
    %v1189 = vadd.f32 0.0, %v1188
    %1190 = vmatmul.f32.gmra.mxu0 %v1127
    %v1191 = vpop.f32.mrf.mxu0
    %v1192 = vadd.f32 0.0, %v1191
    %1193 = vmatmul.f32.gmra.mxu0 %v1130
    %v1194 = vpop.f32.mrf.mxu0
    %v1195 = vadd.f32 0.0, %v1194
    %1196 = vmatmul.f32.gmra.mxu0 %v1133
    %v1197 = vpop.f32.mrf.mxu0
    %v1198 = vadd.f32 0.0, %v1197
    %1199 = vmatmul.f32.gmra.mxu0 %v1136
    %v1200 = vpop.f32.mrf.mxu0
    %v1201 = vadd.f32 0.0, %v1200
    %1202 = vmatmul.f32.gmra.mxu0 %v1139
    %v1203 = vpop.f32.mrf.mxu0
    %v1204 = vadd.f32 0.0, %v1203
    %1205 = vmatmul.f32.gmra.mxu0 %v1142
    %v1206 = vpop.f32.mrf.mxu0
    %v1207 = vadd.f32 0.0, %v1206
    %1208 = vmatmul.f32.gmra.mxu0 %v1145
    %v1209 = vpop.f32.mrf.mxu0
    %v1210 = vadd.f32 0.0, %v1209
    %1211 = vmatmul.f32.gmra.mxu0 %v1148
    %v1212 = vpop.f32.mrf.mxu0
    %v1213 = vadd.f32 0.0, %v1212
    %1214 = vmatmul.f32.gmra.mxu0 %v1151
    %v1215 = vpop.f32.mrf.mxu0
    %v1216 = vadd.f32 0.0, %v1215
    %1217 = vmatmul.f32.gmra.mxu0 %v1154
    %v1218 = vpop.f32.mrf.mxu0
    %v1219 = vadd.f32 0.0, %v1218
    %1220 = vmatmul.f32.gmra.mxu0 %v1157
    %v1221 = vpop.f32.mrf.mxu0
    %v1222 = vadd.f32 0.0, %v1221
    %1223 = vmatmul.f32.gmra.mxu0 %v1160
    %v1224 = vpop.f32.mrf.mxu0
    %v1225 = vadd.f32 0.0, %v1224
    %1226 = vdwg.mxu0
    %v1227 = vadd.f32 %v1077, %v1180
    %v1228 = vadd.f32 %v1078, %v1183
    %v1229 = vadd.f32 %v1079, %v1186
    %v1230 = vadd.f32 %v1080, %v1189
    %v1231 = vadd.f32 %v1081, %v1192
    %v1232 = vadd.f32 %v1082, %v1195
    %v1233 = vadd.f32 %v1083, %v1198
    %v1234 = vadd.f32 %v1084, %v1201
    %v1235 = vadd.f32 %v1085, %v1204
    %v1236 = vadd.f32 %v1086, %v1207
    %v1237 = vadd.f32 %v1087, %v1210
    %v1238 = vadd.f32 %v1088, %v1213
    %v1239 = vadd.f32 %v1089, %v1216
    %v1240 = vadd.f32 %v1090, %v1219
    %v1241 = vadd.f32 %v1091, %v1222
    %v1242 = vadd.f32 %v1092, %v1225
    %v1243 = vld [vmem:[%s508 + $0x2] sm:$0xff]
    %v1244 = vld [vmem:[%s508 + $0x12] sm:$0xff]
    %v1245 = vld [vmem:[%s508 + $0x22] sm:$0xff]
    %v1246 = vld [vmem:[%s508 + $0x32] sm:$0xff]
    %v1247 = vld [vmem:[%s508 + $0x42] sm:$0xff]
    %v1248 = vld [vmem:[%s508 + $0x52] sm:$0xff]
    %v1249 = vld [vmem:[%s508 + $0x62] sm:$0xff]
    %v1250 = vld [vmem:[%s508 + $0x72] sm:$0xff]
    %v1251 = vld [vmem:[%s508 + $0xa2] sm:$0xff]
    %v1252 = vld [vmem:[%s508 + $0xb2] sm:$0xff]
    %v1253 = vld [vmem:[%s508 + $0xc2] sm:$0xff]
    %v1254 = vld [vmem:[%s508 + $0xd2] sm:$0xff]
    %v1255 = vld [vmem:[%s508 + $0xe2] sm:$0xff]
    %v1256 = vld [vmem:[%s508 + $0xf2] sm:$0xff]
    %v1257 = vld [vmem:[%s508 + $0x102] sm:$0xff]
    %v1258 = vld [vmem:[%s508 + $0x112] sm:$0xff]
    %s1259 = scalar_lea.vmem %s2, 160
    %v1260 = vld [vmem:[%s1259] sm:$0xff]
    %v1261 = vld [vmem:[%s1259 + $0x8] sm:$0xff]
    %v1262 = vld [vmem:[%s1259 + $0x10] sm:$0xff]
    %v1263 = vld [vmem:[%s1259 + $0x18] sm:$0xff]
    %v1265 = vsel %vm456, %v1243, 0
    %v1268 = vsel %vm456, %v1244, 0
    %v1271 = vsel %vm456, %v1245, 0
    %v1274 = vsel %vm456, %v1246, 0
    %v1277 = vsel %vm456, %v1247, 0
    %v1280 = vsel %vm456, %v1248, 0
    %v1283 = vsel %vm456, %v1249, 0
    %v1286 = vsel %vm456, %v1250, 0
    %v1289 = vsel %vm456, %v1251, 0
    %v1292 = vsel %vm456, %v1252, 0
    %v1295 = vsel %vm456, %v1253, 0
    %v1298 = vsel %vm456, %v1254, 0
    %v1301 = vsel %vm456, %v1255, 0
    %v1304 = vsel %vm456, %v1256, 0
    %v1307 = vsel %vm456, %v1257, 0
    %v1310 = vsel %vm456, %v1258, 0
    %1312 = vmatpush.msra.mxu0 0.0
    %1313 = vmatpush.msra.mxu0 0.0
    %1314 = vmatpush.msra.mxu0 0.0
    %1315 = vmatpush.msra.mxu0 0.0
    %1316 = vmatpush.msra.mxu0 0.0
    %1317 = vmatpush.msra.mxu0 0.0
    %1318 = vmatpush.msra.mxu0 0.0
    %1319 = vmatpush.msra.mxu0 0.0
    %1320 = vmatpush.msra.mxu0 0.0
    %1321 = vmatpush.msra.mxu0 0.0
    %1322 = vmatpush.msra.mxu0 0.0
    %1323 = vmatpush.msra.mxu0 0.0
    %1324 = vmatpush.msra.mxu0 %v1263
    %1325 = vmatpush.msra.mxu0 %v1262
    %1326 = vmatpush.msra.mxu0 %v1261
    %1327 = vmatpush.msra.mxu0 %v1260
    %1328 = vmatmul.f32.gmra.mxu0 %v1265
    %v1329 = vpop.f32.mrf.mxu0
    %v1330 = vadd.f32 0.0, %v1329
    %1331 = vmatmul.f32.gmra.mxu0 %v1268
    %v1332 = vpop.f32.mrf.mxu0
    %v1333 = vadd.f32 0.0, %v1332
    %1334 = vmatmul.f32.gmra.mxu0 %v1271
    %v1335 = vpop.f32.mrf.mxu0
    %v1336 = vadd.f32 0.0, %v1335
    %1337 = vmatmul.f32.gmra.mxu0 %v1274
    %v1338 = vpop.f32.mrf.mxu0
    %v1339 = vadd.f32 0.0, %v1338
    %1340 = vmatmul.f32.gmra.mxu0 %v1277
    %v1341 = vpop.f32.mrf.mxu0
    %v1342 = vadd.f32 0.0, %v1341
    %1343 = vmatmul.f32.gmra.mxu0 %v1280
    %v1344 = vpop.f32.mrf.mxu0
    %v1345 = vadd.f32 0.0, %v1344
    %1346 = vmatmul.f32.gmra.mxu0 %v1283
    %v1347 = vpop.f32.mrf.mxu0
    %v1348 = vadd.f32 0.0, %v1347
    %1349 = vmatmul.f32.gmra.mxu0 %v1286
    %v1350 = vpop.f32.mrf.mxu0
    %v1351 = vadd.f32 0.0, %v1350
    %1352 = vmatmul.f32.gmra.mxu0 %v1289
    %v1353 = vpop.f32.mrf.mxu0
    %v1354 = vadd.f32 0.0, %v1353
    %1355 = vmatmul.f32.gmra.mxu0 %v1292
    %v1356 = vpop.f32.mrf.mxu0
    %v1357 = vadd.f32 0.0, %v1356
    %1358 = vmatmul.f32.gmra.mxu0 %v1295
    %v1359 = vpop.f32.mrf.mxu0
    %v1360 = vadd.f32 0.0, %v1359
    %1361 = vmatmul.f32.gmra.mxu0 %v1298
    %v1362 = vpop.f32.mrf.mxu0
    %v1363 = vadd.f32 0.0, %v1362
    %1364 = vmatmul.f32.gmra.mxu0 %v1301
    %v1365 = vpop.f32.mrf.mxu0
    %v1366 = vadd.f32 0.0, %v1365
    %1367 = vmatmul.f32.gmra.mxu0 %v1304
    %v1368 = vpop.f32.mrf.mxu0
    %v1369 = vadd.f32 0.0, %v1368
    %1370 = vmatmul.f32.gmra.mxu0 %v1307
    %v1371 = vpop.f32.mrf.mxu0
    %v1372 = vadd.f32 0.0, %v1371
    %1373 = vmatmul.f32.gmra.mxu0 %v1310
    %v1374 = vpop.f32.mrf.mxu0
    %v1375 = vadd.f32 0.0, %v1374
    %1376 = vdwg.mxu0
    %v1377 = vadd.f32 %v1227, %v1330
    %v1378 = vadd.f32 %v1228, %v1333
    %v1379 = vadd.f32 %v1229, %v1336
    %v1380 = vadd.f32 %v1230, %v1339
    %v1381 = vadd.f32 %v1231, %v1342
    %v1382 = vadd.f32 %v1232, %v1345
    %v1383 = vadd.f32 %v1233, %v1348
    %v1384 = vadd.f32 %v1234, %v1351
    %v1385 = vadd.f32 %v1235, %v1354
    %v1386 = vadd.f32 %v1236, %v1357
    %v1387 = vadd.f32 %v1237, %v1360
    %v1388 = vadd.f32 %v1238, %v1363
    %v1389 = vadd.f32 %v1239, %v1366
    %v1390 = vadd.f32 %v1240, %v1369
    %v1391 = vadd.f32 %v1241, %v1372
    %v1392 = vadd.f32 %v1242, %v1375
    %s1393 = scalar_lea.vmem [#allocation3], 32
    %v1394 = vld [vmem:[%s1393] sm:$0xff]
    %v1395 = vld [vmem:[%s1393 + $0x10] sm:$0xff]
    %v1396 = vld [vmem:[%s1393 + $0x20] sm:$0xff]
    %v1397 = vld [vmem:[%s1393 + $0x30] sm:$0xff]
    %v1398 = vld [vmem:[%s1393 + $0x40] sm:$0xff]
    %v1399 = vld [vmem:[%s1393 + $0x50] sm:$0xff]
    %v1400 = vld [vmem:[%s1393 + $0x60] sm:$0xff]
    %v1401 = vld [vmem:[%s1393 + $0x70] sm:$0xff]
    %v1402 = vld [vmem:[%s1393 + $0xa0] sm:$0xff]
    %v1403 = vld [vmem:[%s1393 + $0xb0] sm:$0xff]
    %v1404 = vld [vmem:[%s1393 + $0xc0] sm:$0xff]
    %v1405 = vld [vmem:[%s1393 + $0xd0] sm:$0xff]
    %v1406 = vld [vmem:[%s1393 + $0xe0] sm:$0xff]
    %v1407 = vld [vmem:[%s1393 + $0xf0] sm:$0xff]
    %v1408 = vld [vmem:[%s1393 + $0x100] sm:$0xff]
    %v1409 = vld [vmem:[%s1393 + $0x110] sm:$0xff]
    %s1410 = scalar_lea.vmem %s2, 192
    %v1411 = vld [vmem:[%s1410] sm:$0xff]
    %v1412 = vld [vmem:[%s1410 + $0x8] sm:$0xff]
    %v1413 = vld [vmem:[%s1410 + $0x10] sm:$0xff]
    %v1414 = vld [vmem:[%s1410 + $0x18] sm:$0xff]
    %v1416 = vsel %vm456, %v1394, 0
    %v1419 = vsel %vm456, %v1395, 0
    %v1422 = vsel %vm456, %v1396, 0
    %v1425 = vsel %vm456, %v1397, 0
    %v1428 = vsel %vm456, %v1398, 0
    %v1431 = vsel %vm456, %v1399, 0
    %v1434 = vsel %vm456, %v1400, 0
    %v1437 = vsel %vm456, %v1401, 0
    %v1440 = vsel %vm456, %v1402, 0
    %v1443 = vsel %vm456, %v1403, 0
    %v1446 = vsel %vm456, %v1404, 0
    %v1449 = vsel %vm456, %v1405, 0
    %v1452 = vsel %vm456, %v1406, 0
    %v1455 = vsel %vm456, %v1407, 0
    %v1458 = vsel %vm456, %v1408, 0
    %v1461 = vsel %vm456, %v1409, 0
    %1463 = vmatpush.msra.mxu0 0.0
    %1464 = vmatpush.msra.mxu0 0.0
    %1465 = vmatpush.msra.mxu0 0.0
    %1466 = vmatpush.msra.mxu0 0.0
    %1467 = vmatpush.msra.mxu0 0.0
    %1468 = vmatpush.msra.mxu0 0.0
    %1469 = vmatpush.msra.mxu0 0.0
    %1470 = vmatpush.msra.mxu0 0.0
    %1471 = vmatpush.msra.mxu0 0.0
    %1472 = vmatpush.msra.mxu0 0.0
    %1473 = vmatpush.msra.mxu0 0.0
    %1474 = vmatpush.msra.mxu0 0.0
    %1475 = vmatpush.msra.mxu0 %v1414
    %1476 = vmatpush.msra.mxu0 %v1413
    %1477 = vmatpush.msra.mxu0 %v1412
    %1478 = vmatpush.msra.mxu0 %v1411
    %1479 = vmatmul.f32.gmra.mxu0 %v1416
    %v1480 = vpop.f32.mrf.mxu0
    %v1481 = vadd.f32 0.0, %v1480
    %1482 = vmatmul.f32.gmra.mxu0 %v1419
    %v1483 = vpop.f32.mrf.mxu0
    %v1484 = vadd.f32 0.0, %v1483
    %1485 = vmatmul.f32.gmra.mxu0 %v1422
    %v1486 = vpop.f32.mrf.mxu0
    %v1487 = vadd.f32 0.0, %v1486
    %1488 = vmatmul.f32.gmra.mxu0 %v1425
    %v1489 = vpop.f32.mrf.mxu0
    %v1490 = vadd.f32 0.0, %v1489
    %1491 = vmatmul.f32.gmra.mxu0 %v1428
    %v1492 = vpop.f32.mrf.mxu0
    %v1493 = vadd.f32 0.0, %v1492
    %1494 = vmatmul.f32.gmra.mxu0 %v1431
    %v1495 = vpop.f32.mrf.mxu0
    %v1496 = vadd.f32 0.0, %v1495
    %1497 = vmatmul.f32.gmra.mxu0 %v1434
    %v1498 = vpop.f32.mrf.mxu0
    %v1499 = vadd.f32 0.0, %v1498
    %1500 = vmatmul.f32.gmra.mxu0 %v1437
    %v1501 = vpop.f32.mrf.mxu0
    %v1502 = vadd.f32 0.0, %v1501
    %1503 = vmatmul.f32.gmra.mxu0 %v1440
    %v1504 = vpop.f32.mrf.mxu0
    %v1505 = vadd.f32 0.0, %v1504
    %1506 = vmatmul.f32.gmra.mxu0 %v1443
    %v1507 = vpop.f32.mrf.mxu0
    %v1508 = vadd.f32 0.0, %v1507
    %1509 = vmatmul.f32.gmra.mxu0 %v1446
    %v1510 = vpop.f32.mrf.mxu0
    %v1511 = vadd.f32 0.0, %v1510
    %1512 = vmatmul.f32.gmra.mxu0 %v1449
    %v1513 = vpop.f32.mrf.mxu0
    %v1514 = vadd.f32 0.0, %v1513
    %1515 = vmatmul.f32.gmra.mxu0 %v1452
    %v1516 = vpop.f32.mrf.mxu0
    %v1517 = vadd.f32 0.0, %v1516
    %1518 = vmatmul.f32.gmra.mxu0 %v1455
    %v1519 = vpop.f32.mrf.mxu0
    %v1520 = vadd.f32 0.0, %v1519
    %1521 = vmatmul.f32.gmra.mxu0 %v1458
    %v1522 = vpop.f32.mrf.mxu0
    %v1523 = vadd.f32 0.0, %v1522
    %1524 = vmatmul.f32.gmra.mxu0 %v1461
    %v1525 = vpop.f32.mrf.mxu0
    %v1526 = vadd.f32 0.0, %v1525
    %1527 = vdwg.mxu0
    %v1528 = vadd.f32 %v1377, %v1481
    %v1529 = vadd.f32 %v1378, %v1484
    %v1530 = vadd.f32 %v1379, %v1487
    %v1531 = vadd.f32 %v1380, %v1490
    %v1532 = vadd.f32 %v1381, %v1493
    %v1533 = vadd.f32 %v1382, %v1496
    %v1534 = vadd.f32 %v1383, %v1499
    %v1535 = vadd.f32 %v1384, %v1502
    %v1536 = vadd.f32 %v1385, %v1505
    %v1537 = vadd.f32 %v1386, %v1508
    %v1538 = vadd.f32 %v1387, %v1511
    %v1539 = vadd.f32 %v1388, %v1514
    %v1540 = vadd.f32 %v1389, %v1517
    %v1541 = vadd.f32 %v1390, %v1520
    %v1542 = vadd.f32 %v1391, %v1523
    %v1543 = vadd.f32 %v1392, %v1526
    %v1544 = vld [vmem:[%s1393 + $0x1] sm:$0xff]
    %v1545 = vld [vmem:[%s1393 + $0x11] sm:$0xff]
    %v1546 = vld [vmem:[%s1393 + $0x21] sm:$0xff]
    %v1547 = vld [vmem:[%s1393 + $0x31] sm:$0xff]
    %v1548 = vld [vmem:[%s1393 + $0x41] sm:$0xff]
    %v1549 = vld [vmem:[%s1393 + $0x51] sm:$0xff]
    %v1550 = vld [vmem:[%s1393 + $0x61] sm:$0xff]
    %v1551 = vld [vmem:[%s1393 + $0x71] sm:$0xff]
    %v1552 = vld [vmem:[%s1393 + $0xa1] sm:$0xff]
    %v1553 = vld [vmem:[%s1393 + $0xb1] sm:$0xff]
    %v1554 = vld [vmem:[%s1393 + $0xc1] sm:$0xff]
    %v1555 = vld [vmem:[%s1393 + $0xd1] sm:$0xff]
    %v1556 = vld [vmem:[%s1393 + $0xe1] sm:$0xff]
    %v1557 = vld [vmem:[%s1393 + $0xf1] sm:$0xff]
    %v1558 = vld [vmem:[%s1393 + $0x101] sm:$0xff]
    %v1559 = vld [vmem:[%s1393 + $0x111] sm:$0xff]
    %s1560 = scalar_lea.vmem %s2, 224
    %v1561 = vld [vmem:[%s1560] sm:$0xff]
    %v1562 = vld [vmem:[%s1560 + $0x8] sm:$0xff]
    %v1563 = vld [vmem:[%s1560 + $0x10] sm:$0xff]
    %v1564 = vld [vmem:[%s1560 + $0x18] sm:$0xff]
    %v1566 = vsel %vm456, %v1544, 0
    %v1569 = vsel %vm456, %v1545, 0
    %v1572 = vsel %vm456, %v1546, 0
    %v1575 = vsel %vm456, %v1547, 0
    %v1578 = vsel %vm456, %v1548, 0
    %v1581 = vsel %vm456, %v1549, 0
    %v1584 = vsel %vm456, %v1550, 0
    %v1587 = vsel %vm456, %v1551, 0
    %v1590 = vsel %vm456, %v1552, 0
    %v1593 = vsel %vm456, %v1553, 0
    %v1596 = vsel %vm456, %v1554, 0
    %v1599 = vsel %vm456, %v1555, 0
    %v1602 = vsel %vm456, %v1556, 0
    %v1605 = vsel %vm456, %v1557, 0
    %v1608 = vsel %vm456, %v1558, 0
    %v1611 = vsel %vm456, %v1559, 0
    %1613 = vmatpush.msra.mxu0 0.0
    %1614 = vmatpush.msra.mxu0 0.0
    %1615 = vmatpush.msra.mxu0 0.0
    %1616 = vmatpush.msra.mxu0 0.0
    %1617 = vmatpush.msra.mxu0 0.0
    %1618 = vmatpush.msra.mxu0 0.0
    %1619 = vmatpush.msra.mxu0 0.0
    %1620 = vmatpush.msra.mxu0 0.0
    %1621 = vmatpush.msra.mxu0 0.0
    %1622 = vmatpush.msra.mxu0 0.0
    %1623 = vmatpush.msra.mxu0 0.0
    %1624 = vmatpush.msra.mxu0 0.0
    %1625 = vmatpush.msra.mxu0 %v1564
    %1626 = vmatpush.msra.mxu0 %v1563
    %1627 = vmatpush.msra.mxu0 %v1562
    %1628 = vmatpush.msra.mxu0 %v1561
    %1629 = vmatmul.f32.gmra.mxu0 %v1566
    %v1630 = vpop.f32.mrf.mxu0
    %v1631 = vadd.f32 0.0, %v1630
    %1632 = vmatmul.f32.gmra.mxu0 %v1569
    %v1633 = vpop.f32.mrf.mxu0
    %v1634 = vadd.f32 0.0, %v1633
    %1635 = vmatmul.f32.gmra.mxu0 %v1572
    %v1636 = vpop.f32.mrf.mxu0
    %v1637 = vadd.f32 0.0, %v1636
    %1638 = vmatmul.f32.gmra.mxu0 %v1575
    %v1639 = vpop.f32.mrf.mxu0
    %v1640 = vadd.f32 0.0, %v1639
    %1641 = vmatmul.f32.gmra.mxu0 %v1578
    %v1642 = vpop.f32.mrf.mxu0
    %v1643 = vadd.f32 0.0, %v1642
    %1644 = vmatmul.f32.gmra.mxu0 %v1581
    %v1645 = vpop.f32.mrf.mxu0
    %v1646 = vadd.f32 0.0, %v1645
    %1647 = vmatmul.f32.gmra.mxu0 %v1584
    %v1648 = vpop.f32.mrf.mxu0
    %v1649 = vadd.f32 0.0, %v1648
    %1650 = vmatmul.f32.gmra.mxu0 %v1587
    %v1651 = vpop.f32.mrf.mxu0
    %v1652 = vadd.f32 0.0, %v1651
    %1653 = vmatmul.f32.gmra.mxu0 %v1590
    %v1654 = vpop.f32.mrf.mxu0
    %v1655 = vadd.f32 0.0, %v1654
    %1656 = vmatmul.f32.gmra.mxu0 %v1593
    %v1657 = vpop.f32.mrf.mxu0
    %v1658 = vadd.f32 0.0, %v1657
    %1659 = vmatmul.f32.gmra.mxu0 %v1596
    %v1660 = vpop.f32.mrf.mxu0
    %v1661 = vadd.f32 0.0, %v1660
    %1662 = vmatmul.f32.gmra.mxu0 %v1599
    %v1663 = vpop.f32.mrf.mxu0
    %v1664 = vadd.f32 0.0, %v1663
    %1665 = vmatmul.f32.gmra.mxu0 %v1602
    %v1666 = vpop.f32.mrf.mxu0
    %v1667 = vadd.f32 0.0, %v1666
    %1668 = vmatmul.f32.gmra.mxu0 %v1605
    %v1669 = vpop.f32.mrf.mxu0
    %v1670 = vadd.f32 0.0, %v1669
    %1671 = vmatmul.f32.gmra.mxu0 %v1608
    %v1672 = vpop.f32.mrf.mxu0
    %v1673 = vadd.f32 0.0, %v1672
    %1674 = vmatmul.f32.gmra.mxu0 %v1611
    %v1675 = vpop.f32.mrf.mxu0
    %v1676 = vadd.f32 0.0, %v1675
    %1677 = vdwg.mxu0
    %v1678 = vadd.f32 %v1528, %v1631
    %v1679 = vadd.f32 %v1529, %v1634
    %v1680 = vadd.f32 %v1530, %v1637
    %v1681 = vadd.f32 %v1531, %v1640
    %v1682 = vadd.f32 %v1532, %v1643
    %v1683 = vadd.f32 %v1533, %v1646
    %v1684 = vadd.f32 %v1534, %v1649
    %v1685 = vadd.f32 %v1535, %v1652
    %v1686 = vadd.f32 %v1536, %v1655
    %v1687 = vadd.f32 %v1537, %v1658
    %v1688 = vadd.f32 %v1538, %v1661
    %v1689 = vadd.f32 %v1539, %v1664
    %v1690 = vadd.f32 %v1540, %v1667
    %v1691 = vadd.f32 %v1541, %v1670
    %v1692 = vadd.f32 %v1542, %v1673
    %v1693 = vadd.f32 %v1543, %v1676
    %v1694 = vld [vmem:[%s1393 + $0x2] sm:$0xff]
    %v1695 = vld [vmem:[%s1393 + $0x12] sm:$0xff]
    %v1696 = vld [vmem:[%s1393 + $0x22] sm:$0xff]
    %v1697 = vld [vmem:[%s1393 + $0x32] sm:$0xff]
    %v1698 = vld [vmem:[%s1393 + $0x42] sm:$0xff]
    %v1699 = vld [vmem:[%s1393 + $0x52] sm:$0xff]
    %v1700 = vld [vmem:[%s1393 + $0x62] sm:$0xff]
    %v1701 = vld [vmem:[%s1393 + $0x72] sm:$0xff]
    %v1702 = vld [vmem:[%s1393 + $0xa2] sm:$0xff]
    %v1703 = vld [vmem:[%s1393 + $0xb2] sm:$0xff]
    %v1704 = vld [vmem:[%s1393 + $0xc2] sm:$0xff]
    %v1705 = vld [vmem:[%s1393 + $0xd2] sm:$0xff]
    %v1706 = vld [vmem:[%s1393 + $0xe2] sm:$0xff]
    %v1707 = vld [vmem:[%s1393 + $0xf2] sm:$0xff]
    %v1708 = vld [vmem:[%s1393 + $0x102] sm:$0xff]
    %v1709 = vld [vmem:[%s1393 + $0x112] sm:$0xff]
    %s1710 = scalar_lea.vmem %s2, 256
    %v1711 = vld [vmem:[%s1710] sm:$0xff]
    %v1712 = vld [vmem:[%s1710 + $0x8] sm:$0xff]
    %v1713 = vld [vmem:[%s1710 + $0x10] sm:$0xff]
    %v1714 = vld [vmem:[%s1710 + $0x18] sm:$0xff]
    %v1716 = vsel %vm456, %v1694, 0
    %v1719 = vsel %vm456, %v1695, 0
    %v1722 = vsel %vm456, %v1696, 0
    %v1725 = vsel %vm456, %v1697, 0
    %v1728 = vsel %vm456, %v1698, 0
    %v1731 = vsel %vm456, %v1699, 0
    %v1734 = vsel %vm456, %v1700, 0
    %v1737 = vsel %vm456, %v1701, 0
    %v1740 = vsel %vm456, %v1702, 0
    %v1743 = vsel %vm456, %v1703, 0
    %v1746 = vsel %vm456, %v1704, 0
    %v1749 = vsel %vm456, %v1705, 0
    %v1752 = vsel %vm456, %v1706, 0
    %v1755 = vsel %vm456, %v1707, 0
    %v1758 = vsel %vm456, %v1708, 0
    %v1761 = vsel %vm456, %v1709, 0
    %1763 = vmatpush.msra.mxu0 0.0
    %1764 = vmatpush.msra.mxu0 0.0
    %1765 = vmatpush.msra.mxu0 0.0
    %1766 = vmatpush.msra.mxu0 0.0
    %1767 = vmatpush.msra.mxu0 0.0
    %1768 = vmatpush.msra.mxu0 0.0
    %1769 = vmatpush.msra.mxu0 0.0
    %1770 = vmatpush.msra.mxu0 0.0
    %1771 = vmatpush.msra.mxu0 0.0
    %1772 = vmatpush.msra.mxu0 0.0
    %1773 = vmatpush.msra.mxu0 0.0
    %1774 = vmatpush.msra.mxu0 0.0
    %1775 = vmatpush.msra.mxu0 %v1714
    %1776 = vmatpush.msra.mxu0 %v1713
    %1777 = vmatpush.msra.mxu0 %v1712
    %1778 = vmatpush.msra.mxu0 %v1711
    %1779 = vmatmul.f32.gmra.mxu0 %v1716
    %v1780 = vpop.f32.mrf.mxu0
    %v1781 = vadd.f32 0.0, %v1780
    %1782 = vmatmul.f32.gmra.mxu0 %v1719
    %v1783 = vpop.f32.mrf.mxu0
    %v1784 = vadd.f32 0.0, %v1783
    %1785 = vmatmul.f32.gmra.mxu0 %v1722
    %v1786 = vpop.f32.mrf.mxu0
    %v1787 = vadd.f32 0.0, %v1786
    %1788 = vmatmul.f32.gmra.mxu0 %v1725
    %v1789 = vpop.f32.mrf.mxu0
    %v1790 = vadd.f32 0.0, %v1789
    %1791 = vmatmul.f32.gmra.mxu0 %v1728
    %v1792 = vpop.f32.mrf.mxu0
    %v1793 = vadd.f32 0.0, %v1792
    %1794 = vmatmul.f32.gmra.mxu0 %v1731
    %v1795 = vpop.f32.mrf.mxu0
    %v1796 = vadd.f32 0.0, %v1795
    %1797 = vmatmul.f32.gmra.mxu0 %v1734
    %v1798 = vpop.f32.mrf.mxu0
    %v1799 = vadd.f32 0.0, %v1798
    %1800 = vmatmul.f32.gmra.mxu0 %v1737
    %v1801 = vpop.f32.mrf.mxu0
    %v1802 = vadd.f32 0.0, %v1801
    %1803 = vmatmul.f32.gmra.mxu0 %v1740
    %v1804 = vpop.f32.mrf.mxu0
    %v1805 = vadd.f32 0.0, %v1804
    %1806 = vmatmul.f32.gmra.mxu0 %v1743
    %v1807 = vpop.f32.mrf.mxu0
    %v1808 = vadd.f32 0.0, %v1807
    %1809 = vmatmul.f32.gmra.mxu0 %v1746
    %v1810 = vpop.f32.mrf.mxu0
    %v1811 = vadd.f32 0.0, %v1810
    %1812 = vmatmul.f32.gmra.mxu0 %v1749
    %v1813 = vpop.f32.mrf.mxu0
    %v1814 = vadd.f32 0.0, %v1813
    %1815 = vmatmul.f32.gmra.mxu0 %v1752
    %v1816 = vpop.f32.mrf.mxu0
    %v1817 = vadd.f32 0.0, %v1816
    %1818 = vmatmul.f32.gmra.mxu0 %v1755
    %v1819 = vpop.f32.mrf.mxu0
    %v1820 = vadd.f32 0.0, %v1819
    %1821 = vmatmul.f32.gmra.mxu0 %v1758
    %v1822 = vpop.f32.mrf.mxu0
    %v1823 = vadd.f32 0.0, %v1822
    %1824 = vmatmul.f32.gmra.mxu0 %v1761
    %v1825 = vpop.f32.mrf.mxu0
    %v1826 = vadd.f32 0.0, %v1825
    %1827 = vdwg.mxu0
    %v1828 = vadd.f32 %v1678, %v1781
    %v1829 = vadd.f32 %v1679, %v1784
    %v1830 = vadd.f32 %v1680, %v1787
    %v1831 = vadd.f32 %v1681, %v1790
    %v1832 = vadd.f32 %v1682, %v1793
    %v1833 = vadd.f32 %v1683, %v1796
    %v1834 = vadd.f32 %v1684, %v1799
    %v1835 = vadd.f32 %v1685, %v1802
    %v1836 = vadd.f32 %v1686, %v1805
    %v1837 = vadd.f32 %v1687, %v1808
    %v1838 = vadd.f32 %v1688, %v1811
    %v1839 = vadd.f32 %v1689, %v1814
    %v1840 = vadd.f32 %v1690, %v1817
    %v1841 = vadd.f32 %v1691, %v1820
    %v1842 = vadd.f32 %v1692, %v1823
    %v1843 = vadd.f32 %v1693, %v1826
    %v1844 = vperm.slane %v525, 0
    %v1845 = vadd.f32 %v1828, %v1844
    %v1846 = vadd.f32 %v1829, %v1844
    %v1847 = vadd.f32 %v1830, %v1844
    %v1848 = vadd.f32 %v1831, %v1844
    %v1849 = vadd.f32 %v1832, %v1844
    %v1850 = vadd.f32 %v1833, %v1844
    %v1851 = vadd.f32 %v1834, %v1844
    %v1852 = vadd.f32 %v1835, %v1844
    %v1853 = vadd.f32 %v1836, %v1844
    %v1854 = vadd.f32 %v1837, %v1844
    %v1855 = vadd.f32 %v1838, %v1844
    %v1856 = vadd.f32 %v1839, %v1844
    %v1857 = vadd.f32 %v1840, %v1844
    %v1858 = vadd.f32 %v1841, %v1844
    %v1859 = vadd.f32 %v1842, %v1844
    %v1860 = vadd.f32 %v1843, %v1844
    %v1861 = vmax.f32 %v1845, 0.0
    %v1862 = vmax.f32 %v1846, 0.0
    %v1863 = vmax.f32 %v1847, 0.0
    %v1864 = vmax.f32 %v1848, 0.0
    %v1865 = vmax.f32 %v1849, 0.0
    %v1866 = vmax.f32 %v1850, 0.0
    %v1867 = vmax.f32 %v1851, 0.0
    %v1868 = vmax.f32 %v1852, 0.0
    %v1869 = vmax.f32 %v1853, 0.0
    %v1870 = vmax.f32 %v1854, 0.0
    %v1871 = vmax.f32 %v1855, 0.0
    %v1872 = vmax.f32 %v1856, 0.0
    %v1873 = vmax.f32 %v1857, 0.0
    %v1874 = vmax.f32 %v1858, 0.0
    %v1875 = vmax.f32 %v1859, 0.0
    %v1876 = vmax.f32 %v1860, 0.0
    %v1877 = vld [vmem:[%s4 + $0x2] sm:$0x1]
    %v1878 = vsel %vm456, %v1861, 0.0
    %v1879 = vsel %vm456, %v1862, 0.0
    %v1880 = vadd.f32 %v1878, %v1879
    %v1881 = vsel %vm456, %v1863, 0.0
    %v1882 = vadd.f32 %v1880, %v1881
    %v1883 = vsel %vm456, %v1864, 0.0
    %v1884 = vadd.f32 %v1882, %v1883
    %v1885 = vsel %vm456, %v1865, 0.0
    %v1886 = vadd.f32 %v1884, %v1885
    %v1887 = vsel %vm456, %v1866, 0.0
    %v1888 = vadd.f32 %v1886, %v1887
    %v1889 = vsel %vm456, %v1867, 0.0
    %v1890 = vadd.f32 %v1888, %v1889
    %v1891 = vsel %vm456, %v1868, 0.0
    %v1892 = vadd.f32 %v1890, %v1891
    %v1893 = vrot.slane %v1892, 4
    %v1894 = vadd.f32 %v1892, %v1893
    %v1895 = vrot.slane %v1894, 2
    %v1896 = vadd.f32 %v1894, %v1895
    %v1897 = vrot.slane %v1896, 1
    %v1898 = vadd.f32 %v1896, %v1897
    %v1899 = vsel %vm456, %v1869, 0.0
    %v1900 = vsel %vm456, %v1870, 0.0
    %v1901 = vadd.f32 %v1899, %v1900
    %v1902 = vsel %vm456, %v1871, 0.0
    %v1903 = vadd.f32 %v1901, %v1902
    %v1904 = vsel %vm456, %v1872, 0.0
    %v1905 = vadd.f32 %v1903, %v1904
    %v1906 = vsel %vm456, %v1873, 0.0
    %v1907 = vadd.f32 %v1905, %v1906
    %v1908 = vsel %vm456, %v1874, 0.0
    %v1909 = vadd.f32 %v1907, %v1908
    %v1910 = vsel %vm456, %v1875, 0.0
    %v1911 = vadd.f32 %v1909, %v1910
    %v1912 = vsel %vm456, %v1876, 0.0
    %v1913 = vadd.f32 %v1911, %v1912
    %v1914 = vrot.slane %v1913, 4
    %v1915 = vadd.f32 %v1913, %v1914
    %v1916 = vrot.slane %v1915, 2
    %v1917 = vadd.f32 %v1915, %v1916
    %v1918 = vrot.slane %v1917, 1
    %v1919 = vadd.f32 %v1917, %v1918
    %v1920 = vrcp.pop 64.0
    %v1921 = vmul.f32 64.0, %v1920
    %v1922 = vsub.f32 1.0, %v1921
    %v1923 = vmul.f32 %v1920, %v1922
    %v1924 = vadd.f32 %v1920, %v1923
    %vm1925 = vweird.f32 %v1920
    %v1926 = vsel %vm1925, %v1920, %v1924
    %v1927 = vmul.f32 %v1898, %v1926
    %v1928 = vmul.f32 %v1919, %v1926
    %v1929 = vld [vmem:[%s3] sm:$0xff]
    %v1930 = vld [vmem:[%s3 + $0x8] sm:$0xff]
    %v1931 = vld [vmem:[%s3 + $0x10] sm:$0xff]
    %v1932 = vld [vmem:[%s3 + $0x18] sm:$0xff]
    %v1933 = vperm.slane %v1877, 0
    %vm1936 = vcmask 1041409
    %v1937 = vsel %vm1936, %v1928, %v1927
    %v1938 = vsel %vm456, %v1937, 0
    %1940 = vmatpush.msra.mxu0 0.0
    %1941 = vmatpush.msra.mxu0 0.0
    %1942 = vmatpush.msra.mxu0 0.0
    %1943 = vmatpush.msra.mxu0 0.0
    %1944 = vmatpush.msra.mxu0 0.0
    %1945 = vmatpush.msra.mxu0 0.0
    %1946 = vmatpush.msra.mxu0 0.0
    %1947 = vmatpush.msra.mxu0 0.0
    %1948 = vmatpush.msra.mxu0 0.0
    %1949 = vmatpush.msra.mxu0 0.0
    %1950 = vmatpush.msra.mxu0 0.0
    %1951 = vmatpush.msra.mxu0 0.0
    %1952 = vmatpush.msra.mxu0 %v1932
    %1953 = vmatpush.msra.mxu0 %v1931
    %1954 = vmatpush.msra.mxu0 %v1930
    %1955 = vmatpush.msra.mxu0 %v1929
    %1956 = vmatmul.f32.gmra.mxu0 %v1938
    %v1957 = vpop.f32.mrf.mxu0
    %v1958 = vadd.f32 %v1933, %v1957
    %1959 = vdwg.mxu0
    %vm1960 = vcmask 123904
    %1961 = vst.msk [vmem:[#allocation4] sm:$0x3] %vm1960, %v1958
    // Predicated region
    $region22: #{extra_label_predict.1} parent=1 // pred_check
      _
    $region23: #{extra_label_predict.1} parent=1 // pred_check_branch
      %1963 = sbr.rel (0) target = $region25
    $region24: #{extra_label_predict.1} parent=1 // pred_region
      %1965 = vsyncadd [#allocation5], 0
      %s1967 = sshll.u32 [#allocation4], 4
      %s1968 = int_to_ptr.vmem [resolvable:$true] %s1967
      %s1969 = sshll.u32 %s5, 4
      %s1970 = int_to_ptr.hbm [resolvable:$true] %s1969
      %1972 = dma.vmem_to_hbm [thread:$0]  %s1968, 32, %s1970, [#allocation5]
    $region25: #{extra_label_predict.1} parent=1 // pred_fallthru
      _
    // Predicated region
    $region26: #{extra_label_predict.1} parent=1 // pred_check
      _
    $region27: #{extra_label_predict.1} parent=1 // pred_check_branch
      %1974 = sbr.rel (0) target = $region29
    $region28: #{extra_label_predict.1} parent=1 // pred_region
      %1976 = dma.done [#allocation5], 32
    $region29: #{extra_label_predict.1} parent=1 // pred_fallthru
      _
    %1977 = vsyncpa [#allocation5], 1

</llo_original>
